<compile_context>
chip_gen: v5e
topology: v5e:2x2
jax: 0.10.0
libtpu: 0.0.40
codegen_flags: <defaults>
</compile_context>

<pallas_src>
import functools

import jax
import jax.numpy as jnp
from jax.experimental import pallas as pl
from jax.experimental.pallas import tpu as pltpu


def _layer_dims(input_dim):
    return (
        (input_dim, input_dim),  # encoder Linear 1
        (input_dim, 16),         # encoder Linear 2
        (16, 8),                 # encoder Linear 3
        (8, 4),                  # encoder Linear 4
        (4, 8),                  # decoder Linear 1
        (8, 16),                 # decoder Linear 2
        (16, input_dim),         # decoder Linear 3 (no ReLU)
    )


def autoencoder_kernel(x_ref, w_ref, b_ref, o_ref, *, dims):
    # x_ref: (T, D) bf16 | w_ref: (L, S, S) f32 | b_ref: (L, S) f32 | o_ref: (T, D) bf16
    h = x_ref[...].astype(jnp.float32)
    w_all = w_ref[...]
    b_all = b_ref[...]
    n = len(dims)
    for i, (din, dout) in enumerate(dims):
        w = w_all[i, :din, :dout]          # static slices of the packed weights
        b = b_all[i : i + 1, :dout]        # (1, dout), broadcasts over rows
        h = jnp.dot(h, w, preferred_element_type=jnp.float32) + b
        if i < n - 1:
            h = jnp.maximum(h, 0.0)        # f32 VPU math (v5e has no bf16 VPU)
    o_ref[...] = h.astype(o_ref.dtype)


def autoencoder_forward(x, params, *, batch_tile=512):
    """x: (B, input_dim) float32. params: list of (W, b) with W=(in,out), b=(1,out).

    Returns (B, input_dim) bfloat16 (bf16-streamed output; accumulation is f32).
    """
    B, D = x.shape
    dims = _layer_dims(D)
    n_layers = len(dims)
    S = max(D, 16)  # padded square slot for every weight matrix

    # --- pack weights / biases into single VMEM-resident blocks ---
    w_pack = jnp.zeros((n_layers, S, S), jnp.float32)
    b_pack = jnp.zeros((n_layers, S), jnp.float32)
    for i, (w, b) in enumerate(params):
        din, dout = w.shape
        w_pack = w_pack.at[i, :din, :dout].set(w.astype(jnp.float32))
        b_pack = b_pack.at[i, :dout].set(b.reshape(-1).astype(jnp.float32))

    # --- pad batch to a tile multiple (cdiv grid; padded rows dropped later) ---
    num_tiles = pl.cdiv(B, batch_tile)
    B_pad = num_tiles * batch_tile
    x_in = x.astype(jnp.bfloat16)
    if B_pad != B:
        x_in = jnp.pad(x_in, ((0, B_pad - B), (0, 0)))

    flops = 2 * B_pad * sum(din * dout for din, dout in dims)
    bytes_accessed = B_pad * D * (2 + 2) + w_pack.size * 4 + b_pack.size * 4

    kernel = functools.partial(autoencoder_kernel, dims=dims)

    out = pl.pallas_call(
        kernel,
        out_shape=jax.ShapeDtypeStruct((B_pad, D), jnp.bfloat16),
        grid_spec=pl.GridSpec(
            grid=(num_tiles,),
            in_specs=[
                pl.BlockSpec((batch_tile, D), lambda i: (i, 0)),
                pl.BlockSpec((n_layers, S, S), lambda i: (0, 0, 0)),
                pl.BlockSpec((n_layers, S), lambda i: (0, 0)),
            ],
            out_specs=pl.BlockSpec((batch_tile, D), lambda i: (i, 0)),
        ),
        compiler_params=pltpu.CompilerParams(
            dimension_semantics=("parallel",),
        ),
        cost_estimate=pl.CostEstimate(
            flops=flops, transcendentals=0, bytes_accessed=bytes_accessed
        ),
    )(x_in, w_pack, b_pack)

    return out[:B]


def init_params(key, input_dim):
    """Deterministic init matching the PyTorch module shapes.
    Linear(in, out) -> W: (in, out), b: (1, out). PyTorch-style uniform bound."""
    params = []
    for (fan_in, fan_out) in _layer_dims(input_dim):
        key, kw, kb = jax.random.split(key, 3)
        bound = 1.0 / jnp.sqrt(fan_in)
        w = jax.random.uniform(kw, (fan_in, fan_out), jnp.float32, -bound, bound)
        b = jax.random.uniform(kb, (1, fan_out), jnp.float32, -bound, bound)
        params.append((w, b))
    return params


def reference_forward(x, params):
    h = x
    n = len(params)
    for i, (w, b) in enumerate(params):
        h = h @ w + b
        if i < n - 1:
            h = jnp.maximum(h, 0.0)
    return h


if __name__ == "__main__":
    INPUT_DIM = 32
    BATCH = 1024        # 2 grid steps of 512 -> both v7x TensorCores get work
    BATCH_TILE = 512

    key = jax.random.PRNGKey(0)
    key, kx = jax.random.split(key)
    x = jax.random.normal(kx, (BATCH, INPUT_DIM), jnp.float32)

    params = init_params(key, INPUT_DIM)

    out = autoencoder_forward(x, params, batch_tile=BATCH_TILE)
    out = jax.block_until_ready(out)

    # Reference on the same bf16-quantized input (the kernel streams x as bf16
    # but accumulates in f32), so the only extra error is the bf16 output cast.
    x_q = x.astype(jnp.bfloat16).astype(jnp.float32)
    ref = reference_forward(x_q, params)

    assert out.shape == (BATCH, INPUT_DIM)
    assert out.dtype == jnp.bfloat16
    out_f32 = out.astype(jnp.float32)
    max_err = jnp.max(jnp.abs(out_f32 - ref))
    assert jnp.allclose(out_f32, ref, atol=3e-2, rtol=3e-2), (
        f"mismatch vs JAX reference, max abs err = {max_err}"
    )

    print("KERNEL_OK")
</pallas_src>

<mosaic_0001>
module attributes {stable_mosaic.version = 11 : i64} {
  func.func @autoencoder_kernel(%arg0: i32, %arg1: memref<512x32xbf16, #tpu.memory_space<vmem>>, %arg2: memref<7x32x32xf32, #tpu.memory_space<vmem>>, %arg3: memref<7x32xf32, #tpu.memory_space<vmem>>, %arg4: memref<512x32xbf16, #tpu.memory_space<vmem>>) attributes {dimension_semantics = [#tpu.dimension_semantics<parallel>], iteration_bounds = array<i64: 2>, scalar_prefetch = 0 : i64, scratch_operands = 0 : i64, tpu.core_type = #tpu.core_type<tc>, window_params = [{transform_indices = @transform_0, window_bounds = array<i64: 512, 32>}, {pipeline_mode = #tpu.pipeline_mode<synchronous>, transform_indices = @transform_1, window_bounds = array<i64: 7, 32, 32>}, {pipeline_mode = #tpu.pipeline_mode<synchronous>, transform_indices = @transform_2, window_bounds = array<i64: 7, 32>}, {transform_indices = @transform_3, window_bounds = array<i64: 512, 32>}]} {
    %c0 = arith.constant 0 : index
    %c0_0 = arith.constant 0 : index
    %0 = vector.load %arg1[%c0, %c0_0] : memref<512x32xbf16, #tpu.memory_space<vmem>>, vector<512x32xbf16>
    %1 = arith.extf %0 : vector<512x32xbf16> to vector<512x32xf32>
    %c0_1 = arith.constant 0 : index
    %c0_2 = arith.constant 0 : index
    %c0_3 = arith.constant 0 : index
    %2 = vector.load %arg2[%c0_1, %c0_2, %c0_3] : memref<7x32x32xf32, #tpu.memory_space<vmem>>, vector<7x32x32xf32>
    %c0_4 = arith.constant 0 : index
    %c0_5 = arith.constant 0 : index
    %3 = vector.load %arg3[%c0_4, %c0_5] : memref<7x32xf32, #tpu.memory_space<vmem>>, vector<7x32xf32>
    %4 = vector.extract_strided_slice %2 {offsets = [0, 0, 0], sizes = [1, 32, 32], strides = [1, 1, 1]} : vector<7x32x32xf32> to vector<1x32x32xf32>
    %5 = vector.shape_cast %4 : vector<1x32x32xf32> to vector<32x32xf32>
    %6 = vector.extract_strided_slice %3 {offsets = [0, 0], sizes = [1, 32], strides = [1, 1]} : vector<7x32xf32> to vector<1x32xf32>
    %cst = arith.constant dense<0.000000e+00> : vector<512x32xf32>
    %7 = tpu.matmul %1, %5, %cst {dimension_numbers = #tpu.dot_dimension_numbers<[1], [0], [0], [1], [0, 0, 1, 1], [], []>} : vector<512x32xf32>, vector<32x32xf32>, vector<512x32xf32> -> vector<512x32xf32>
    %8 = vector.broadcast %6 : vector<1x32xf32> to vector<512x32xf32>
    %9 = arith.addf %7, %8 : vector<512x32xf32>
    %cst_6 = arith.constant 0.000000e+00 : f32
    %10 = vector.broadcast %cst_6 : f32 to vector<512x32xf32>
    %11 = arith.maximumf %9, %10 : vector<512x32xf32>
    %12 = vector.extract_strided_slice %2 {offsets = [1, 0, 0], sizes = [1, 32, 16], strides = [1, 1, 1]} : vector<7x32x32xf32> to vector<1x32x16xf32>
    %13 = vector.shape_cast %12 : vector<1x32x16xf32> to vector<32x16xf32>
    %14 = vector.extract_strided_slice %3 {offsets = [1, 0], sizes = [1, 16], strides = [1, 1]} : vector<7x32xf32> to vector<1x16xf32>
    %cst_7 = arith.constant dense<0.000000e+00> : vector<512x16xf32>
    %15 = tpu.matmul %11, %13, %cst_7 {dimension_numbers = #tpu.dot_dimension_numbers<[1], [0], [0], [1], [0, 0, 1, 1], [], []>} : vector<512x32xf32>, vector<32x16xf32>, vector<512x16xf32> -> vector<512x16xf32>
    %16 = vector.broadcast %14 : vector<1x16xf32> to vector<512x16xf32>
    %17 = arith.addf %15, %16 : vector<512x16xf32>
    %cst_8 = arith.constant 0.000000e+00 : f32
    %18 = vector.broadcast %cst_8 : f32 to vector<512x16xf32>
    %19 = arith.maximumf %17, %18 : vector<512x16xf32>
    %20 = vector.extract_strided_slice %2 {offsets = [2, 0, 0], sizes = [1, 16, 8], strides = [1, 1, 1]} : vector<7x32x32xf32> to vector<1x16x8xf32>
    %21 = vector.shape_cast %20 : vector<1x16x8xf32> to vector<16x8xf32>
    %22 = vector.extract_strided_slice %3 {offsets = [2, 0], sizes = [1, 8], strides = [1, 1]} : vector<7x32xf32> to vector<1x8xf32>
    %cst_9 = arith.constant dense<0.000000e+00> : vector<512x8xf32>
    %23 = tpu.matmul %19, %21, %cst_9 {dimension_numbers = #tpu.dot_dimension_numbers<[1], [0], [0], [1], [0, 0, 1, 1], [], []>} : vector<512x16xf32>, vector<16x8xf32>, vector<512x8xf32> -> vector<512x8xf32>
    %24 = vector.broadcast %22 : vector<1x8xf32> to vector<512x8xf32>
    %25 = arith.addf %23, %24 : vector<512x8xf32>
    %cst_10 = arith.constant 0.000000e+00 : f32
    %26 = vector.broadcast %cst_10 : f32 to vector<512x8xf32>
    %27 = arith.maximumf %25, %26 : vector<512x8xf32>
    %28 = vector.extract_strided_slice %2 {offsets = [3, 0, 0], sizes = [1, 8, 4], strides = [1, 1, 1]} : vector<7x32x32xf32> to vector<1x8x4xf32>
    %29 = vector.shape_cast %28 : vector<1x8x4xf32> to vector<8x4xf32>
    %30 = vector.extract_strided_slice %3 {offsets = [3, 0], sizes = [1, 4], strides = [1, 1]} : vector<7x32xf32> to vector<1x4xf32>
    %cst_11 = arith.constant dense<0.000000e+00> : vector<512x4xf32>
    %31 = tpu.matmul %27, %29, %cst_11 {dimension_numbers = #tpu.dot_dimension_numbers<[1], [0], [0], [1], [0, 0, 1, 1], [], []>} : vector<512x8xf32>, vector<8x4xf32>, vector<512x4xf32> -> vector<512x4xf32>
    %32 = vector.broadcast %30 : vector<1x4xf32> to vector<512x4xf32>
    %33 = arith.addf %31, %32 : vector<512x4xf32>
    %cst_12 = arith.constant 0.000000e+00 : f32
    %34 = vector.broadcast %cst_12 : f32 to vector<512x4xf32>
    %35 = arith.maximumf %33, %34 : vector<512x4xf32>
    %36 = vector.extract_strided_slice %2 {offsets = [4, 0, 0], sizes = [1, 4, 8], strides = [1, 1, 1]} : vector<7x32x32xf32> to vector<1x4x8xf32>
    %37 = vector.shape_cast %36 : vector<1x4x8xf32> to vector<4x8xf32>
    %38 = vector.extract_strided_slice %3 {offsets = [4, 0], sizes = [1, 8], strides = [1, 1]} : vector<7x32xf32> to vector<1x8xf32>
    %cst_13 = arith.constant dense<0.000000e+00> : vector<512x8xf32>
    %39 = tpu.matmul %35, %37, %cst_13 {dimension_numbers = #tpu.dot_dimension_numbers<[1], [0], [0], [1], [0, 0, 1, 1], [], []>} : vector<512x4xf32>, vector<4x8xf32>, vector<512x8xf32> -> vector<512x8xf32>
    %40 = vector.broadcast %38 : vector<1x8xf32> to vector<512x8xf32>
    %41 = arith.addf %39, %40 : vector<512x8xf32>
    %cst_14 = arith.constant 0.000000e+00 : f32
    %42 = vector.broadcast %cst_14 : f32 to vector<512x8xf32>
    %43 = arith.maximumf %41, %42 : vector<512x8xf32>
    %44 = vector.extract_strided_slice %2 {offsets = [5, 0, 0], sizes = [1, 8, 16], strides = [1, 1, 1]} : vector<7x32x32xf32> to vector<1x8x16xf32>
    %45 = vector.shape_cast %44 : vector<1x8x16xf32> to vector<8x16xf32>
    %46 = vector.extract_strided_slice %3 {offsets = [5, 0], sizes = [1, 16], strides = [1, 1]} : vector<7x32xf32> to vector<1x16xf32>
    %cst_15 = arith.constant dense<0.000000e+00> : vector<512x16xf32>
    %47 = tpu.matmul %43, %45, %cst_15 {dimension_numbers = #tpu.dot_dimension_numbers<[1], [0], [0], [1], [0, 0, 1, 1], [], []>} : vector<512x8xf32>, vector<8x16xf32>, vector<512x16xf32> -> vector<512x16xf32>
    %48 = vector.broadcast %46 : vector<1x16xf32> to vector<512x16xf32>
    %49 = arith.addf %47, %48 : vector<512x16xf32>
    %cst_16 = arith.constant 0.000000e+00 : f32
    %50 = vector.broadcast %cst_16 : f32 to vector<512x16xf32>
    %51 = arith.maximumf %49, %50 : vector<512x16xf32>
    %52 = vector.extract_strided_slice %2 {offsets = [6, 0, 0], sizes = [1, 16, 32], strides = [1, 1, 1]} : vector<7x32x32xf32> to vector<1x16x32xf32>
    %53 = vector.shape_cast %52 : vector<1x16x32xf32> to vector<16x32xf32>
    %54 = vector.extract_strided_slice %3 {offsets = [6, 0], sizes = [1, 32], strides = [1, 1]} : vector<7x32xf32> to vector<1x32xf32>
    %cst_17 = arith.constant dense<0.000000e+00> : vector<512x32xf32>
    %55 = tpu.matmul %51, %53, %cst_17 {dimension_numbers = #tpu.dot_dimension_numbers<[1], [0], [0], [1], [0, 0, 1, 1], [], []>} : vector<512x16xf32>, vector<16x32xf32>, vector<512x32xf32> -> vector<512x32xf32>
    %56 = vector.broadcast %54 : vector<1x32xf32> to vector<512x32xf32>
    %57 = arith.addf %55, %56 : vector<512x32xf32>
    %58 = arith.truncf %57 : vector<512x32xf32> to vector<512x32xbf16>
    %c0_18 = arith.constant 0 : index
    %c0_19 = arith.constant 0 : index
    %59 = vector.load %arg4[%c0_18, %c0_19] : memref<512x32xbf16, #tpu.memory_space<vmem>>, vector<512x32xbf16>
    tpu.vector_store %arg4[%c0_18, %c0_19], %58 {strides = array<i32>} : memref<512x32xbf16, #tpu.memory_space<vmem>>, vector<512x32xbf16>,
    return
  }
  func.func @transform_0(%arg0: i32) -> (i32, i32) {
    %c0_i32 = arith.constant 0 : i32
    %c0_i32_0 = arith.constant 0 : i32
    return %arg0, %c0_i32 : i32, i32
  }
  func.func @transform_1(%arg0: i32) -> (i32, i32, i32) {
    %c0_i32 = arith.constant 0 : i32
    %c0_i32_0 = arith.constant 0 : i32
    %c0_i32_1 = arith.constant 0 : i32
    %c0_i32_2 = arith.constant 0 : i32
    return %c0_i32, %c0_i32_0, %c0_i32_1 : i32, i32, i32
  }
  func.func @transform_2(%arg0: i32) -> (i32, i32) {
    %c0_i32 = arith.constant 0 : i32
    %c0_i32_0 = arith.constant 0 : i32
    %c0_i32_1 = arith.constant 0 : i32
    return %c0_i32, %c0_i32_0 : i32, i32
  }
  func.func @transform_3(%arg0: i32) -> (i32, i32) {
    %c0_i32 = arith.constant 0 : i32
    %c0_i32_0 = arith.constant 0 : i32
    return %arg0, %c0_i32 : i32, i32
  }
}

</mosaic_0001>

<llo_original>
// kernel: tpu_custom_call.1
$region0: #{tpu_custom_call.1}
  #allocation0 [shape = 'u32[]', space=smem, size = 0x4, offset = 0x4, fixed_abs, tag = 'smem constant byte address 0x4 - core index']
  #allocation1 [shape = 'u32[72,128]{1,0:T(1,128)}', space=vmem, size = 0x9000, scoped, tag = 'internal scratch']
  %s0 = inlined_call_operand.vmem [shape: bf16[1024,32], index: 0, kind: input, shape index: {}]
  %s1 = inlined_call_operand.vmem [shape: f32[7,32,32], index: 1, kind: input, shape index: {}]
  %s2 = inlined_call_operand.vmem [shape: f32[7,32], index: 2, kind: input, shape index: {}]
  %s3 = inlined_call_operand.vmem [shape: bf16[1024,32], index: 3, kind: output, shape index: {}]
  %s4 = sld [smem:[#allocation0]]
  $region45: #{tpu_custom_call.1} parent=0
    _
  %s6 = ssub.s32 1, %s4
  %s7 = scalar_select 0, %s6, %s4
  loop: start=0, step=1, limit=4
  $region2: #{tpu_custom_call.1} parent=0 // loop_pre_header
    _
  $region3: #{tpu_custom_call.1} parent=0 // loop_header
    %s9 = sphi 0, %s13
    %p10 = scmp.ge.s32.totalorder %s9, 4
    %s19 = sphi 0, %s21
    %s22 = sphi 0, %s19
    %s23 = sphi 0, %s22
    %s39 = sphi 0, %s23
    %s43 = sphi 0, %s43
    %s45 = sphi 0, %s43
    %s46 = sphi 0, %s45
    %s60 = sphi 0, %s46
    %s64 = sphi 0, %s64
    %s66 = sphi 0, %s64
    %s67 = sphi 0, %s66
    %s81 = sphi 0, %s67
    %s87 = sphi 0, %s89
    %s90 = sphi 0, %s87
    %s91 = sphi 0, %s90
    %s107 = sphi 0, %s91
  $region4: #{tpu_custom_call.1} parent=0 // loop_header_branch
    %12 = sbr.rel (%p10) target = $region8
  $region5: #{tpu_custom_call.1} parent=0 // loop_body
    %s14 = ssub.s32 %s9, 1
    %s15 = ssub.s32 %s9, 2
    %s16 = sadd.s32 %s9, 1
    %s17 = ssub.s32 %s9, %s16
    %p18 = scmp.eq.s32.totalorder %s17, 0
    %s20 = sadd.s32 %s19, 1
    %s21 = scalar_select %p18, %s19, %s20
    %p24 = pneg %p18
    %p25 = scmp.eq.s32.totalorder %s9, 1
    %p26 = por %p24, %p25
    %p27 = scmp.ne.s32.totalorder %s19, %s22
    %p28 = scmp.eq.s32.totalorder %s9, 0
    %p29 = por %p27, %p28
    %p30 = scmp.ne.s32.totalorder %s19, %s22
    %p31 = scmp.eq.s32.totalorder %s14, 1
    %p32 = por %p30, %p31
    %p33 = scmp.ne.s32.totalorder %s22, %s23
    %p34 = scmp.eq.s32.totalorder %s14, 0
    %p35 = por %p33, %p34
    %p36 = scmp.ne.s32.totalorder %s22, %s23
    %p37 = scmp.eq.s32.totalorder %s15, 1
    %p38 = por %p36, %p37
    %p40 = scmp.ne.s32.totalorder %s23, %s39
    %p41 = scmp.eq.s32.totalorder %s15, 0
    %p42 = por %p40, %p41
    %s44 = sadd.s32 %s43, 1
    %p47 = scmp.eq.s32.totalorder %s9, 1
    %p48 = scmp.ne.s32.totalorder %s43, %s45
    %p49 = scmp.eq.s32.totalorder %s9, 0
    %p50 = por %p48, %p49
    %p51 = scmp.ne.s32.totalorder %s43, %s45
    %p52 = scmp.eq.s32.totalorder %s14, 1
    %p53 = por %p51, %p52
    %p54 = scmp.ne.s32.totalorder %s45, %s46
    %p55 = scmp.eq.s32.totalorder %s14, 0
    %p56 = por %p54, %p55
    %p57 = scmp.ne.s32.totalorder %s45, %s46
    %p58 = scmp.eq.s32.totalorder %s15, 1
    %p59 = por %p57, %p58
    %p61 = scmp.ne.s32.totalorder %s46, %s60
    %p62 = scmp.eq.s32.totalorder %s15, 0
    %p63 = por %p61, %p62
    %s65 = sadd.s32 %s64, 1
    %p68 = scmp.eq.s32.totalorder %s9, 1
    %p69 = scmp.ne.s32.totalorder %s64, %s66
    %p70 = scmp.eq.s32.totalorder %s9, 0
    %p71 = por %p69, %p70
    %p72 = scmp.ne.s32.totalorder %s64, %s66
    %p73 = scmp.eq.s32.totalorder %s14, 1
    %p74 = por %p72, %p73
    %p75 = scmp.ne.s32.totalorder %s66, %s67
    %p76 = scmp.eq.s32.totalorder %s14, 0
    %p77 = por %p75, %p76
    %p78 = scmp.ne.s32.totalorder %s66, %s67
    %p79 = scmp.eq.s32.totalorder %s15, 1
    %p80 = por %p78, %p79
    %p82 = scmp.ne.s32.totalorder %s67, %s81
    %p83 = scmp.eq.s32.totalorder %s15, 0
    %p84 = por %p82, %p83
    %s85 = ssub.s32 %s9, %s16
    %p86 = scmp.eq.s32.totalorder %s85, 0
    %s88 = sadd.s32 %s87, 1
    %s89 = scalar_select %p86, %s87, %s88
    %p92 = pneg %p86
    %p93 = scmp.eq.s32.totalorder %s9, 1
    %p94 = por %p92, %p93
    %p95 = scmp.ne.s32.totalorder %s87, %s90
    %p96 = scmp.eq.s32.totalorder %s9, 0
    %p97 = por %p95, %p96
    %p98 = scmp.ne.s32.totalorder %s87, %s90
    %p99 = scmp.eq.s32.totalorder %s14, 1
    %p100 = por %p98, %p99
    %p101 = scmp.ne.s32.totalorder %s90, %s91
    %p102 = scmp.eq.s32.totalorder %s14, 0
    %p103 = por %p101, %p102
    %p104 = scmp.ne.s32.totalorder %s90, %s91
    %p105 = scmp.eq.s32.totalorder %s15, 1
    %p106 = por %p104, %p105
    %p108 = scmp.ne.s32.totalorder %s91, %s107
    %p109 = scmp.eq.s32.totalorder %s15, 0
    %p110 = por %p108, %p109
    %p111 = scmp.le.s32.totalorder 1, %s9
    %p112 = scmp.lt.s32.totalorder %s9, 3
    %p113 = pnand %p111, %p112
    %p114 = pneg %p113
    // Predicated region
    $region9: #{tpu_custom_call.1} parent=5 // pred_check
      _
    $region10: #{tpu_custom_call.1} parent=5 // pred_check_branch
      %116 = sbr.rel (%p113) target = $region12
    $region11: #{tpu_custom_call.1} parent=5 // pred_region
      %s117 = ssub.s32 %s9, 1
      // Predicated region
      $region13: #{tpu_custom_call.1} parent=11 // pred_check
        %p118 = pneg %p56
      $region14: #{tpu_custom_call.1} parent=11 // pred_check_branch
        %120 = sbr.rel (%p118) target = $region16
      $region15: #{tpu_custom_call.1} parent=11 // pred_region
        _
      $region16: #{tpu_custom_call.1} parent=11 // pred_fallthru
        _
      // Predicated region
      $region17: #{tpu_custom_call.1} parent=11 // pred_check
        %p121 = pneg %p77
      $region18: #{tpu_custom_call.1} parent=11 // pred_check_branch
        %123 = sbr.rel (%p121) target = $region20
      $region19: #{tpu_custom_call.1} parent=11 // pred_region
        _
      $region20: #{tpu_custom_call.1} parent=11 // pred_fallthru
        _
    $region12: #{tpu_custom_call.1} parent=5 // pred_fallthru
      _
    %p124 = scmp.lt.s32.totalorder %s9, 2
    // Predicated region
    $region21: #{tpu_custom_call.1} parent=5 // pred_check
      %p125 = pneg %p124
    $region22: #{tpu_custom_call.1} parent=5 // pred_check_branch
      %127 = sbr.rel (%p125) target = $region24
    $region23: #{tpu_custom_call.1} parent=5 // pred_region
      // Predicated region
      $region25: #{tpu_custom_call.1} parent=23 // pred_check
        %p128 = pneg %p29
      $region26: #{tpu_custom_call.1} parent=23 // pred_check_branch
        %130 = sbr.rel (%p128) target = $region28
      $region27: #{tpu_custom_call.1} parent=23 // pred_region
        %s131 = smul.u32 64, %s9
        %p132 = scmp.lt.s32.totalorder %s131, 127
        %s133 = scalar_select %p132, %s131, 127
        %s134 = smul.addr %s133, 4
        %s135 = scalar_lea.vmem %s0, %s134
        %s136 = smul.u32 64, %s9
      $region28: #{tpu_custom_call.1} parent=23 // pred_fallthru
        _
    $region24: #{tpu_custom_call.1} parent=5 // pred_fallthru
      _
    %p137 = scmp.le.s32.totalorder 1, %s9
    %p138 = scmp.lt.s32.totalorder %s9, 3
    %p139 = pnand %p137, %p138
    %p140 = pneg %p139
    // Predicated region
    $region29: #{tpu_custom_call.1} parent=5 // pred_check
      _
    $region30: #{tpu_custom_call.1} parent=5 // pred_check_branch
      %142 = sbr.rel (%p139) target = $region32
    $region31: #{tpu_custom_call.1} parent=5 // pred_region
      %s143 = ssub.s32 %s9, 1
      %s144 = smul.u32 64, %s14
      %p145 = scmp.lt.s32.totalorder %s144, 127
      %s146 = scalar_select %p145, %s144, 127
      %s147 = smul.addr %s146, 4
      %s148 = scalar_lea.vmem %s0, %s147
      %p149 = pneg %p35
      %p150 = pneg %p32
      %p151 = pneg %p56
      %p152 = pneg %p53
      %p153 = pneg %p77
      %p154 = pneg %p74
      %p155 = pneg %p103
      %p156 = pneg %p100
      %s157 = smul.u32 64, %s14
      %p158 = scmp.lt.s32.totalorder %s157, 127
      %s159 = scalar_select %p158, %s157, 127
      %s160 = smul.addr %s159, 4
      %s161 = scalar_lea.vmem %s3, %s160
      %s162 = smul.u32 64, %s14
      %p163 = scmp.lt.s32.totalorder %s162, 127
      %s164 = scalar_select %p163, %s162, 127
      %s165 = smul.addr %s164, 4
      %s166 = scalar_lea.vmem %s0, %s165
      %s167 = smul.u32 64, %s14
      %s168 = smul.u32 64, %s14
      %p169 = scmp.lt.s32.totalorder %s168, 127
      %s170 = scalar_select %p169, %s168, 127
      %s171 = smul.addr %s170, 4
      %s172 = scalar_lea.vmem %s3, %s171
      %s173 = smul.u32 64, %s14
      %v174 = vld [vmem:[%s166] sm:$0xf]
      %v175 = vld [vmem:[%s166 + $0x4] sm:$0xf]
      %v176 = vld [vmem:[%s166 + $0x8] sm:$0xf]
      %v177 = vld [vmem:[%s166 + $0xc] sm:$0xf]
      %v178 = vld [vmem:[%s166 + $0x10] sm:$0xf]
      %v179 = vld [vmem:[%s166 + $0x14] sm:$0xf]
      %v180 = vld [vmem:[%s166 + $0x18] sm:$0xf]
      %v181 = vld [vmem:[%s166 + $0x1c] sm:$0xf]
      %v182 = vld [vmem:[%s166 + $0x20] sm:$0xf]
      %v183 = vld [vmem:[%s166 + $0x24] sm:$0xf]
      %v184 = vld [vmem:[%s166 + $0x28] sm:$0xf]
      %v185 = vld [vmem:[%s166 + $0x2c] sm:$0xf]
      %v186 = vld [vmem:[%s166 + $0x30] sm:$0xf]
      %v187 = vld [vmem:[%s166 + $0x34] sm:$0xf]
      %v188 = vld [vmem:[%s166 + $0x38] sm:$0xf]
      %v189 = vld [vmem:[%s166 + $0x3c] sm:$0xf]
      %v190 = vld [vmem:[%s166 + $0x40] sm:$0xf]
      %v191 = vld [vmem:[%s166 + $0x44] sm:$0xf]
      %v192 = vld [vmem:[%s166 + $0x48] sm:$0xf]
      %v193 = vld [vmem:[%s166 + $0x4c] sm:$0xf]
      %v194 = vld [vmem:[%s166 + $0x50] sm:$0xf]
      %v195 = vld [vmem:[%s166 + $0x54] sm:$0xf]
      %v196 = vld [vmem:[%s166 + $0x58] sm:$0xf]
      %v197 = vld [vmem:[%s166 + $0x5c] sm:$0xf]
      %v198 = vld [vmem:[%s166 + $0x60] sm:$0xf]
      %v199 = vld [vmem:[%s166 + $0x64] sm:$0xf]
      %v200 = vld [vmem:[%s166 + $0x68] sm:$0xf]
      %v201 = vld [vmem:[%s166 + $0x6c] sm:$0xf]
      %v202 = vld [vmem:[%s166 + $0x70] sm:$0xf]
      %v203 = vld [vmem:[%s166 + $0x74] sm:$0xf]
      %v204 = vld [vmem:[%s166 + $0x78] sm:$0xf]
      %v205 = vld [vmem:[%s166 + $0x7c] sm:$0xf]
      %v206 = vld [vmem:[%s166 + $0x80] sm:$0xf]
      %v207 = vld [vmem:[%s166 + $0x84] sm:$0xf]
      %v208 = vld [vmem:[%s166 + $0x88] sm:$0xf]
      %v209 = vld [vmem:[%s166 + $0x8c] sm:$0xf]
      %v210 = vld [vmem:[%s166 + $0x90] sm:$0xf]
      %v211 = vld [vmem:[%s166 + $0x94] sm:$0xf]
      %v212 = vld [vmem:[%s166 + $0x98] sm:$0xf]
      %v213 = vld [vmem:[%s166 + $0x9c] sm:$0xf]
      %v214 = vld [vmem:[%s166 + $0xa0] sm:$0xf]
      %v215 = vld [vmem:[%s166 + $0xa4] sm:$0xf]
      %v216 = vld [vmem:[%s166 + $0xa8] sm:$0xf]
      %v217 = vld [vmem:[%s166 + $0xac] sm:$0xf]
      %v218 = vld [vmem:[%s166 + $0xb0] sm:$0xf]
      %v219 = vld [vmem:[%s166 + $0xb4] sm:$0xf]
      %v220 = vld [vmem:[%s166 + $0xb8] sm:$0xf]
      %v221 = vld [vmem:[%s166 + $0xbc] sm:$0xf]
      %v222 = vld [vmem:[%s166 + $0xc0] sm:$0xf]
      %v223 = vld [vmem:[%s166 + $0xc4] sm:$0xf]
      %v224 = vld [vmem:[%s166 + $0xc8] sm:$0xf]
      %v225 = vld [vmem:[%s166 + $0xcc] sm:$0xf]
      %v226 = vld [vmem:[%s166 + $0xd0] sm:$0xf]
      %v227 = vld [vmem:[%s166 + $0xd4] sm:$0xf]
      %v228 = vld [vmem:[%s166 + $0xd8] sm:$0xf]
      %v229 = vld [vmem:[%s166 + $0xdc] sm:$0xf]
      %v230 = vld [vmem:[%s166 + $0xe0] sm:$0xf]
      %v231 = vld [vmem:[%s166 + $0xe4] sm:$0xf]
      %v232 = vld [vmem:[%s166 + $0xe8] sm:$0xf]
      %v233 = vld [vmem:[%s166 + $0xec] sm:$0xf]
      %v234 = vld [vmem:[%s166 + $0xf0] sm:$0xf]
      %v235 = vld [vmem:[%s166 + $0xf4] sm:$0xf]
      %v236 = vld [vmem:[%s166 + $0xf8] sm:$0xf]
      %v237 = vld [vmem:[%s166 + $0xfc] sm:$0xf]
      %v238 = vunpack.c.l.bf16 %v174
      %v239 = vunpack.c.l.bf16 %v175
      %v240 = vunpack.c.l.bf16 %v176
      %v241 = vunpack.c.l.bf16 %v177
      %v242 = vunpack.c.l.bf16 %v178
      %v243 = vunpack.c.l.bf16 %v179
      %v244 = vunpack.c.l.bf16 %v180
      %v245 = vunpack.c.l.bf16 %v181
      %v246 = vunpack.c.l.bf16 %v182
      %v247 = vunpack.c.l.bf16 %v183
      %v248 = vunpack.c.l.bf16 %v184
      %v249 = vunpack.c.l.bf16 %v185
      %v250 = vunpack.c.l.bf16 %v186
      %v251 = vunpack.c.l.bf16 %v187
      %v252 = vunpack.c.l.bf16 %v188
      %v253 = vunpack.c.l.bf16 %v189
      %v254 = vunpack.c.l.bf16 %v190
      %v255 = vunpack.c.l.bf16 %v191
      %v256 = vunpack.c.l.bf16 %v192
      %v257 = vunpack.c.l.bf16 %v193
      %v258 = vunpack.c.l.bf16 %v194
      %v259 = vunpack.c.l.bf16 %v195
      %v260 = vunpack.c.l.bf16 %v196
      %v261 = vunpack.c.l.bf16 %v197
      %v262 = vunpack.c.l.bf16 %v198
      %v263 = vunpack.c.l.bf16 %v199
      %v264 = vunpack.c.l.bf16 %v200
      %v265 = vunpack.c.l.bf16 %v201
      %v266 = vunpack.c.l.bf16 %v202
      %v267 = vunpack.c.l.bf16 %v203
      %v268 = vunpack.c.l.bf16 %v204
      %v269 = vunpack.c.l.bf16 %v205
      %v270 = vunpack.c.l.bf16 %v206
      %v271 = vunpack.c.l.bf16 %v207
      %v272 = vunpack.c.l.bf16 %v208
      %v273 = vunpack.c.l.bf16 %v209
      %v274 = vunpack.c.l.bf16 %v210
      %v275 = vunpack.c.l.bf16 %v211
      %v276 = vunpack.c.l.bf16 %v212
      %v277 = vunpack.c.l.bf16 %v213
      %v278 = vunpack.c.l.bf16 %v214
      %v279 = vunpack.c.l.bf16 %v215
      %v280 = vunpack.c.l.bf16 %v216
      %v281 = vunpack.c.l.bf16 %v217
      %v282 = vunpack.c.l.bf16 %v218
      %v283 = vunpack.c.l.bf16 %v219
      %v284 = vunpack.c.l.bf16 %v220
      %v285 = vunpack.c.l.bf16 %v221
      %v286 = vunpack.c.l.bf16 %v222
      %v287 = vunpack.c.l.bf16 %v223
      %v288 = vunpack.c.l.bf16 %v224
      %v289 = vunpack.c.l.bf16 %v225
      %v290 = vunpack.c.l.bf16 %v226
      %v291 = vunpack.c.l.bf16 %v227
      %v292 = vunpack.c.l.bf16 %v228
      %v293 = vunpack.c.l.bf16 %v229
      %v294 = vunpack.c.l.bf16 %v230
      %v295 = vunpack.c.l.bf16 %v231
      %v296 = vunpack.c.l.bf16 %v232
      %v297 = vunpack.c.l.bf16 %v233
      %v298 = vunpack.c.l.bf16 %v234
      %v299 = vunpack.c.l.bf16 %v235
      %v300 = vunpack.c.l.bf16 %v236
      %v301 = vunpack.c.l.bf16 %v237
      %v302 = vld [vmem:[%s1] sm:$0xff]
      %v303 = vld [vmem:[%s1 + $0x8] sm:$0xff]
      %v304 = vld [vmem:[%s1 + $0x10] sm:$0xff]
      %v305 = vld [vmem:[%s1 + $0x18] sm:$0xff]
      %v306 = vld [vmem:[%s1 + $0x20] sm:$0xff]
      %v307 = vld [vmem:[%s1 + $0x28] sm:$0xff]
      %v308 = vld [vmem:[%s1 + $0x30] sm:$0xff]
      %v309 = vld [vmem:[%s1 + $0x38] sm:$0xff]
      %v310 = vld [vmem:[%s1 + $0x40] sm:$0xff]
      %v311 = vld [vmem:[%s1 + $0x48] sm:$0xff]
      %v312 = vld [vmem:[%s1 + $0x60] sm:$0xff]
      %v313 = vld [vmem:[%s1 + $0x80] sm:$0xff]
      %v314 = vld [vmem:[%s1 + $0xa0] sm:$0xff]
      %v315 = vld [vmem:[%s1 + $0xc0] sm:$0xff]
      %v316 = vld [vmem:[%s1 + $0xc8] sm:$0xff]
      %v317 = vld [vmem:[%s2] sm:$0x7f]
      %v318 = vperm.slane %v317, 0
      %vm319 = vcmask 261120
      %v321 = vsel %vm319, %v238, 0
      %v324 = vsel %vm319, %v239, 0
      %v327 = vsel %vm319, %v240, 0
      %v330 = vsel %vm319, %v241, 0
      %v333 = vsel %vm319, %v242, 0
      %v336 = vsel %vm319, %v243, 0
      %v339 = vsel %vm319, %v244, 0
      %v342 = vsel %vm319, %v245, 0
      %v345 = vsel %vm319, %v246, 0
      %v348 = vsel %vm319, %v247, 0
      %v351 = vsel %vm319, %v248, 0
      %v354 = vsel %vm319, %v249, 0
      %v357 = vsel %vm319, %v250, 0
      %v360 = vsel %vm319, %v251, 0
      %v363 = vsel %vm319, %v252, 0
      %v366 = vsel %vm319, %v253, 0
      %v369 = vsel %vm319, %v254, 0
      %v372 = vsel %vm319, %v255, 0
      %v375 = vsel %vm319, %v256, 0
      %v378 = vsel %vm319, %v257, 0
      %v381 = vsel %vm319, %v258, 0
      %v384 = vsel %vm319, %v259, 0
      %v387 = vsel %vm319, %v260, 0
      %v390 = vsel %vm319, %v261, 0
      %v393 = vsel %vm319, %v262, 0
      %v396 = vsel %vm319, %v263, 0
      %v399 = vsel %vm319, %v264, 0
      %v402 = vsel %vm319, %v265, 0
      %v405 = vsel %vm319, %v266, 0
      %v408 = vsel %vm319, %v267, 0
      %v411 = vsel %vm319, %v268, 0
      %v414 = vsel %vm319, %v269, 0
      %v417 = vsel %vm319, %v270, 0
      %v420 = vsel %vm319, %v271, 0
      %v423 = vsel %vm319, %v272, 0
      %v426 = vsel %vm319, %v273, 0
      %v429 = vsel %vm319, %v274, 0
      %v432 = vsel %vm319, %v275, 0
      %v435 = vsel %vm319, %v276, 0
      %v438 = vsel %vm319, %v277, 0
      %v441 = vsel %vm319, %v278, 0
      %v444 = vsel %vm319, %v279, 0
      %v447 = vsel %vm319, %v280, 0
      %v450 = vsel %vm319, %v281, 0
      %v453 = vsel %vm319, %v282, 0
      %v456 = vsel %vm319, %v283, 0
      %v459 = vsel %vm319, %v284, 0
      %v462 = vsel %vm319, %v285, 0
      %v465 = vsel %vm319, %v286, 0
      %v468 = vsel %vm319, %v287, 0
      %v471 = vsel %vm319, %v288, 0
      %v474 = vsel %vm319, %v289, 0
      %v477 = vsel %vm319, %v290, 0
      %v480 = vsel %vm319, %v291, 0
      %v483 = vsel %vm319, %v292, 0
      %v486 = vsel %vm319, %v293, 0
      %v489 = vsel %vm319, %v294, 0
      %v492 = vsel %vm319, %v295, 0
      %v495 = vsel %vm319, %v296, 0
      %v498 = vsel %vm319, %v297, 0
      %v501 = vsel %vm319, %v298, 0
      %v504 = vsel %vm319, %v299, 0
      %v507 = vsel %vm319, %v300, 0
      %v510 = vsel %vm319, %v301, 0
      %512 = vmatpush.msra.mxu0 0.0
      %513 = vmatpush.msra.mxu0 0.0
      %514 = vmatpush.msra.mxu0 0.0
      %515 = vmatpush.msra.mxu0 0.0
      %516 = vmatpush.msra.mxu0 0.0
      %517 = vmatpush.msra.mxu0 0.0
      %518 = vmatpush.msra.mxu0 0.0
      %519 = vmatpush.msra.mxu0 0.0
      %520 = vmatpush.msra.mxu0 0.0
      %521 = vmatpush.msra.mxu0 0.0
      %522 = vmatpush.msra.mxu0 0.0
      %523 = vmatpush.msra.mxu0 0.0
      %524 = vmatpush.msra.mxu0 %v305
      %525 = vmatpush.msra.mxu0 %v304
      %526 = vmatpush.msra.mxu0 %v303
      %527 = vmatpush.msra.mxu0 %v302
      %528 = vmatmul.f32.gmra.mxu0 %v321
      %v529 = vpop.f32.mrf.mxu0
      %v530 = vadd.f32 %v318, %v529
      %531 = vmatmul.f32.gmra.mxu0 %v324
      %v532 = vpop.f32.mrf.mxu0
      %v533 = vadd.f32 %v318, %v532
      %534 = vmatmul.f32.gmra.mxu0 %v327
      %v535 = vpop.f32.mrf.mxu0
      %v536 = vadd.f32 %v318, %v535
      %537 = vmatmul.f32.gmra.mxu0 %v330
      %v538 = vpop.f32.mrf.mxu0
      %v539 = vadd.f32 %v318, %v538
      %540 = vmatmul.f32.gmra.mxu0 %v333
      %v541 = vpop.f32.mrf.mxu0
      %v542 = vadd.f32 %v318, %v541
      %543 = vmatmul.f32.gmra.mxu0 %v336
      %v544 = vpop.f32.mrf.mxu0
      %v545 = vadd.f32 %v318, %v544
      %546 = vmatmul.f32.gmra.mxu0 %v339
      %v547 = vpop.f32.mrf.mxu0
      %v548 = vadd.f32 %v318, %v547
      %549 = vmatmul.f32.gmra.mxu0 %v342
      %v550 = vpop.f32.mrf.mxu0
      %v551 = vadd.f32 %v318, %v550
      %552 = vmatmul.f32.gmra.mxu0 %v345
      %v553 = vpop.f32.mrf.mxu0
      %v554 = vadd.f32 %v318, %v553
      %555 = vmatmul.f32.gmra.mxu0 %v348
      %v556 = vpop.f32.mrf.mxu0
      %v557 = vadd.f32 %v318, %v556
      %558 = vmatmul.f32.gmra.mxu0 %v351
      %v559 = vpop.f32.mrf.mxu0
      %v560 = vadd.f32 %v318, %v559
      %561 = vmatmul.f32.gmra.mxu0 %v354
      %v562 = vpop.f32.mrf.mxu0
      %v563 = vadd.f32 %v318, %v562
      %564 = vmatmul.f32.gmra.mxu0 %v357
      %v565 = vpop.f32.mrf.mxu0
      %v566 = vadd.f32 %v318, %v565
      %567 = vmatmul.f32.gmra.mxu0 %v360
      %v568 = vpop.f32.mrf.mxu0
      %v569 = vadd.f32 %v318, %v568
      %570 = vmatmul.f32.gmra.mxu0 %v363
      %v571 = vpop.f32.mrf.mxu0
      %v572 = vadd.f32 %v318, %v571
      %573 = vmatmul.f32.gmra.mxu0 %v366
      %v574 = vpop.f32.mrf.mxu0
      %v575 = vadd.f32 %v318, %v574
      %576 = vmatmul.f32.gmra.mxu0 %v369
      %v577 = vpop.f32.mrf.mxu0
      %v578 = vadd.f32 %v318, %v577
      %579 = vmatmul.f32.gmra.mxu0 %v372
      %v580 = vpop.f32.mrf.mxu0
      %v581 = vadd.f32 %v318, %v580
      %582 = vmatmul.f32.gmra.mxu0 %v375
      %v583 = vpop.f32.mrf.mxu0
      %v584 = vadd.f32 %v318, %v583
      %585 = vmatmul.f32.gmra.mxu0 %v378
      %v586 = vpop.f32.mrf.mxu0
      %v587 = vadd.f32 %v318, %v586
      %588 = vmatmul.f32.gmra.mxu0 %v381
      %v589 = vpop.f32.mrf.mxu0
      %v590 = vadd.f32 %v318, %v589
      %591 = vmatmul.f32.gmra.mxu0 %v384
      %v592 = vpop.f32.mrf.mxu0
      %v593 = vadd.f32 %v318, %v592
      %594 = vmatmul.f32.gmra.mxu0 %v387
      %v595 = vpop.f32.mrf.mxu0
      %v596 = vadd.f32 %v318, %v595
      %597 = vmatmul.f32.gmra.mxu0 %v390
      %v598 = vpop.f32.mrf.mxu0
      %v599 = vadd.f32 %v318, %v598
      %600 = vmatmul.f32.gmra.mxu0 %v393
      %v601 = vpop.f32.mrf.mxu0
      %v602 = vadd.f32 %v318, %v601
      %603 = vmatmul.f32.gmra.mxu0 %v396
      %v604 = vpop.f32.mrf.mxu0
      %v605 = vadd.f32 %v318, %v604
      %606 = vmatmul.f32.gmra.mxu0 %v399
      %v607 = vpop.f32.mrf.mxu0
      %v608 = vadd.f32 %v318, %v607
      %609 = vmatmul.f32.gmra.mxu0 %v402
      %v610 = vpop.f32.mrf.mxu0
      %v611 = vadd.f32 %v318, %v610
      %612 = vmatmul.f32.gmra.mxu0 %v405
      %v613 = vpop.f32.mrf.mxu0
      %v614 = vadd.f32 %v318, %v613
      %615 = vmatmul.f32.gmra.mxu0 %v408
      %v616 = vpop.f32.mrf.mxu0
      %v617 = vadd.f32 %v318, %v616
      %618 = vmatmul.f32.gmra.mxu0 %v411
      %v619 = vpop.f32.mrf.mxu0
      %v620 = vadd.f32 %v318, %v619
      %621 = vmatmul.f32.gmra.mxu0 %v414
      %v622 = vpop.f32.mrf.mxu0
      %v623 = vadd.f32 %v318, %v622
      %624 = vmatmul.f32.gmra.mxu0 %v417
      %v625 = vpop.f32.mrf.mxu0
      %v626 = vadd.f32 %v318, %v625
      %627 = vmatmul.f32.gmra.mxu0 %v420
      %v628 = vpop.f32.mrf.mxu0
      %v629 = vadd.f32 %v318, %v628
      %630 = vmatmul.f32.gmra.mxu0 %v423
      %v631 = vpop.f32.mrf.mxu0
      %v632 = vadd.f32 %v318, %v631
      %633 = vmatmul.f32.gmra.mxu0 %v426
      %v634 = vpop.f32.mrf.mxu0
      %v635 = vadd.f32 %v318, %v634
      %636 = vmatmul.f32.gmra.mxu0 %v429
      %v637 = vpop.f32.mrf.mxu0
      %v638 = vadd.f32 %v318, %v637
      %639 = vmatmul.f32.gmra.mxu0 %v432
      %v640 = vpop.f32.mrf.mxu0
      %v641 = vadd.f32 %v318, %v640
      %642 = vmatmul.f32.gmra.mxu0 %v435
      %v643 = vpop.f32.mrf.mxu0
      %v644 = vadd.f32 %v318, %v643
      %645 = vmatmul.f32.gmra.mxu0 %v438
      %v646 = vpop.f32.mrf.mxu0
      %v647 = vadd.f32 %v318, %v646
      %648 = vmatmul.f32.gmra.mxu0 %v441
      %v649 = vpop.f32.mrf.mxu0
      %v650 = vadd.f32 %v318, %v649
      %651 = vmatmul.f32.gmra.mxu0 %v444
      %v652 = vpop.f32.mrf.mxu0
      %v653 = vadd.f32 %v318, %v652
      %654 = vmatmul.f32.gmra.mxu0 %v447
      %v655 = vpop.f32.mrf.mxu0
      %v656 = vadd.f32 %v318, %v655
      %657 = vmatmul.f32.gmra.mxu0 %v450
      %v658 = vpop.f32.mrf.mxu0
      %v659 = vadd.f32 %v318, %v658
      %660 = vmatmul.f32.gmra.mxu0 %v453
      %v661 = vpop.f32.mrf.mxu0
      %v662 = vadd.f32 %v318, %v661
      %663 = vmatmul.f32.gmra.mxu0 %v456
      %v664 = vpop.f32.mrf.mxu0
      %v665 = vadd.f32 %v318, %v664
      %666 = vmatmul.f32.gmra.mxu0 %v459
      %v667 = vpop.f32.mrf.mxu0
      %v668 = vadd.f32 %v318, %v667
      %669 = vmatmul.f32.gmra.mxu0 %v462
      %v670 = vpop.f32.mrf.mxu0
      %v671 = vadd.f32 %v318, %v670
      %672 = vmatmul.f32.gmra.mxu0 %v465
      %v673 = vpop.f32.mrf.mxu0
      %v674 = vadd.f32 %v318, %v673
      %675 = vmatmul.f32.gmra.mxu0 %v468
      %v676 = vpop.f32.mrf.mxu0
      %v677 = vadd.f32 %v318, %v676
      %678 = vmatmul.f32.gmra.mxu0 %v471
      %v679 = vpop.f32.mrf.mxu0
      %v680 = vadd.f32 %v318, %v679
      %681 = vmatmul.f32.gmra.mxu0 %v474
      %v682 = vpop.f32.mrf.mxu0
      %v683 = vadd.f32 %v318, %v682
      %684 = vmatmul.f32.gmra.mxu0 %v477
      %v685 = vpop.f32.mrf.mxu0
      %v686 = vadd.f32 %v318, %v685
      %687 = vmatmul.f32.gmra.mxu0 %v480
      %v688 = vpop.f32.mrf.mxu0
      %v689 = vadd.f32 %v318, %v688
      %690 = vmatmul.f32.gmra.mxu0 %v483
      %v691 = vpop.f32.mrf.mxu0
      %v692 = vadd.f32 %v318, %v691
      %693 = vmatmul.f32.gmra.mxu0 %v486
      %v694 = vpop.f32.mrf.mxu0
      %v695 = vadd.f32 %v318, %v694
      %696 = vmatmul.f32.gmra.mxu0 %v489
      %v697 = vpop.f32.mrf.mxu0
      %v698 = vadd.f32 %v318, %v697
      %699 = vmatmul.f32.gmra.mxu0 %v492
      %v700 = vpop.f32.mrf.mxu0
      %v701 = vadd.f32 %v318, %v700
      %702 = vmatmul.f32.gmra.mxu0 %v495
      %v703 = vpop.f32.mrf.mxu0
      %v704 = vadd.f32 %v318, %v703
      %705 = vmatmul.f32.gmra.mxu0 %v498
      %v706 = vpop.f32.mrf.mxu0
      %v707 = vadd.f32 %v318, %v706
      %708 = vmatmul.f32.gmra.mxu0 %v501
      %v709 = vpop.f32.mrf.mxu0
      %v710 = vadd.f32 %v318, %v709
      %711 = vmatmul.f32.gmra.mxu0 %v504
      %v712 = vpop.f32.mrf.mxu0
      %v713 = vadd.f32 %v318, %v712
      %714 = vmatmul.f32.gmra.mxu0 %v507
      %v715 = vpop.f32.mrf.mxu0
      %v716 = vadd.f32 %v318, %v715
      %717 = vmatmul.f32.gmra.mxu0 %v510
      %v718 = vpop.f32.mrf.mxu0
      %v719 = vadd.f32 %v318, %v718
      %720 = vdwg.mxu0
      %v721 = vmax.f32 %v530, 0.0
      %v722 = vmax.f32 %v533, 0.0
      %v723 = vmax.f32 %v536, 0.0
      %v724 = vmax.f32 %v539, 0.0
      %v725 = vmax.f32 %v542, 0.0
      %v726 = vmax.f32 %v545, 0.0
      %v727 = vmax.f32 %v548, 0.0
      %v728 = vmax.f32 %v551, 0.0
      %v729 = vmax.f32 %v554, 0.0
      %v730 = vmax.f32 %v557, 0.0
      %v731 = vmax.f32 %v560, 0.0
      %v732 = vmax.f32 %v563, 0.0
      %v733 = vmax.f32 %v566, 0.0
      %v734 = vmax.f32 %v569, 0.0
      %v735 = vmax.f32 %v572, 0.0
      %v736 = vmax.f32 %v575, 0.0
      %v737 = vmax.f32 %v578, 0.0
      %v738 = vmax.f32 %v581, 0.0
      %v739 = vmax.f32 %v584, 0.0
      %v740 = vmax.f32 %v587, 0.0
      %v741 = vmax.f32 %v590, 0.0
      %v742 = vmax.f32 %v593, 0.0
      %v743 = vmax.f32 %v596, 0.0
      %v744 = vmax.f32 %v599, 0.0
      %v745 = vmax.f32 %v602, 0.0
      %v746 = vmax.f32 %v605, 0.0
      %v747 = vmax.f32 %v608, 0.0
      %v748 = vmax.f32 %v611, 0.0
      %v749 = vmax.f32 %v614, 0.0
      %v750 = vmax.f32 %v617, 0.0
      %v751 = vmax.f32 %v620, 0.0
      %v752 = vmax.f32 %v623, 0.0
      %v753 = vmax.f32 %v626, 0.0
      %v754 = vmax.f32 %v629, 0.0
      %v755 = vmax.f32 %v632, 0.0
      %v756 = vmax.f32 %v635, 0.0
      %v757 = vmax.f32 %v638, 0.0
      %v758 = vmax.f32 %v641, 0.0
      %v759 = vmax.f32 %v644, 0.0
      %v760 = vmax.f32 %v647, 0.0
      %v761 = vmax.f32 %v650, 0.0
      %v762 = vmax.f32 %v653, 0.0
      %v763 = vmax.f32 %v656, 0.0
      %v764 = vmax.f32 %v659, 0.0
      %v765 = vmax.f32 %v662, 0.0
      %v766 = vmax.f32 %v665, 0.0
      %v767 = vmax.f32 %v668, 0.0
      %v768 = vmax.f32 %v671, 0.0
      %v769 = vmax.f32 %v674, 0.0
      %v770 = vmax.f32 %v677, 0.0
      %v771 = vmax.f32 %v680, 0.0
      %v772 = vmax.f32 %v683, 0.0
      %v773 = vmax.f32 %v686, 0.0
      %v774 = vmax.f32 %v689, 0.0
      %v775 = vmax.f32 %v692, 0.0
      %v776 = vmax.f32 %v695, 0.0
      %v777 = vmax.f32 %v698, 0.0
      %v778 = vmax.f32 %v701, 0.0
      %v779 = vmax.f32 %v704, 0.0
      %v780 = vmax.f32 %v707, 0.0
      %v781 = vmax.f32 %v710, 0.0
      %v782 = vmax.f32 %v713, 0.0
      %v783 = vmax.f32 %v716, 0.0
      %v784 = vmax.f32 %v719, 0.0
      %v785 = vperm.slane %v317, 1
      %v787 = vsel %vm319, %v721, 0
      %v790 = vsel %vm319, %v722, 0
      %v793 = vsel %vm319, %v723, 0
      %v796 = vsel %vm319, %v724, 0
      %v799 = vsel %vm319, %v725, 0
      %v802 = vsel %vm319, %v726, 0
      %v805 = vsel %vm319, %v727, 0
      %v808 = vsel %vm319, %v728, 0
      %v811 = vsel %vm319, %v729, 0
      %v814 = vsel %vm319, %v730, 0
      %v817 = vsel %vm319, %v731, 0
      %v820 = vsel %vm319, %v732, 0
      %v823 = vsel %vm319, %v733, 0
      %v826 = vsel %vm319, %v734, 0
      %v829 = vsel %vm319, %v735, 0
      %v832 = vsel %vm319, %v736, 0
      %v835 = vsel %vm319, %v737, 0
      %v838 = vsel %vm319, %v738, 0
      %v841 = vsel %vm319, %v739, 0
      %v844 = vsel %vm319, %v740, 0
      %v847 = vsel %vm319, %v741, 0
      %v850 = vsel %vm319, %v742, 0
      %v853 = vsel %vm319, %v743, 0
      %v856 = vsel %vm319, %v744, 0
      %v859 = vsel %vm319, %v745, 0
      %v862 = vsel %vm319, %v746, 0
      %v865 = vsel %vm319, %v747, 0
      %v868 = vsel %vm319, %v748, 0
      %v871 = vsel %vm319, %v749, 0
      %v874 = vsel %vm319, %v750, 0
      %v877 = vsel %vm319, %v751, 0
      %v880 = vsel %vm319, %v752, 0
      %v883 = vsel %vm319, %v753, 0
      %v886 = vsel %vm319, %v754, 0
      %v889 = vsel %vm319, %v755, 0
      %v892 = vsel %vm319, %v756, 0
      %v895 = vsel %vm319, %v757, 0
      %v898 = vsel %vm319, %v758, 0
      %v901 = vsel %vm319, %v759, 0
      %v904 = vsel %vm319, %v760, 0
      %v907 = vsel %vm319, %v761, 0
      %v910 = vsel %vm319, %v762, 0
      %v913 = vsel %vm319, %v763, 0
      %v916 = vsel %vm319, %v764, 0
      %v919 = vsel %vm319, %v765, 0
      %v922 = vsel %vm319, %v766, 0
      %v925 = vsel %vm319, %v767, 0
      %v928 = vsel %vm319, %v768, 0
      %v931 = vsel %vm319, %v769, 0
      %v934 = vsel %vm319, %v770, 0
      %v937 = vsel %vm319, %v771, 0
      %v940 = vsel %vm319, %v772, 0
      %v943 = vsel %vm319, %v773, 0
      %v946 = vsel %vm319, %v774, 0
      %v949 = vsel %vm319, %v775, 0
      %v952 = vsel %vm319, %v776, 0
      %v955 = vsel %vm319, %v777, 0
      %v958 = vsel %vm319, %v778, 0
      %v961 = vsel %vm319, %v779, 0
      %v964 = vsel %vm319, %v780, 0
      %v967 = vsel %vm319, %v781, 0
      %v970 = vsel %vm319, %v782, 0
      %v973 = vsel %vm319, %v783, 0
      %v976 = vsel %vm319, %v784, 0
      %978 = vmatpush.msra.mxu0 0.0
      %979 = vmatpush.msra.mxu0 0.0
      %980 = vmatpush.msra.mxu0 0.0
      %981 = vmatpush.msra.mxu0 0.0
      %982 = vmatpush.msra.mxu0 0.0
      %983 = vmatpush.msra.mxu0 0.0
      %984 = vmatpush.msra.mxu0 0.0
      %985 = vmatpush.msra.mxu0 0.0
      %986 = vmatpush.msra.mxu0 0.0
      %987 = vmatpush.msra.mxu0 0.0
      %988 = vmatpush.msra.mxu0 0.0
      %989 = vmatpush.msra.mxu0 0.0
      %990 = vmatpush.msra.mxu0 %v309
      %991 = vmatpush.msra.mxu0 %v308
      %992 = vmatpush.msra.mxu0 %v307
      %993 = vmatpush.msra.mxu0 %v306
      %994 = vmatmul.f32.gmra.mxu0 %v787
      %v995 = vpop.f32.mrf.mxu0
      %v996 = vadd.f32 %v785, %v995
      %997 = vmatmul.f32.gmra.mxu0 %v790
      %v998 = vpop.f32.mrf.mxu0
      %v999 = vadd.f32 %v785, %v998
      %1000 = vmatmul.f32.gmra.mxu0 %v793
      %v1001 = vpop.f32.mrf.mxu0
      %v1002 = vadd.f32 %v785, %v1001
      %1003 = vmatmul.f32.gmra.mxu0 %v796
      %v1004 = vpop.f32.mrf.mxu0
      %v1005 = vadd.f32 %v785, %v1004
      %1006 = vmatmul.f32.gmra.mxu0 %v799
      %v1007 = vpop.f32.mrf.mxu0
      %v1008 = vadd.f32 %v785, %v1007
      %1009 = vmatmul.f32.gmra.mxu0 %v802
      %v1010 = vpop.f32.mrf.mxu0
      %v1011 = vadd.f32 %v785, %v1010
      %1012 = vmatmul.f32.gmra.mxu0 %v805
      %v1013 = vpop.f32.mrf.mxu0
      %v1014 = vadd.f32 %v785, %v1013
      %1015 = vmatmul.f32.gmra.mxu0 %v808
      %v1016 = vpop.f32.mrf.mxu0
      %v1017 = vadd.f32 %v785, %v1016
      %1018 = vmatmul.f32.gmra.mxu0 %v811
      %v1019 = vpop.f32.mrf.mxu0
      %v1020 = vadd.f32 %v785, %v1019
      %1021 = vmatmul.f32.gmra.mxu0 %v814
      %v1022 = vpop.f32.mrf.mxu0
      %v1023 = vadd.f32 %v785, %v1022
      %1024 = vmatmul.f32.gmra.mxu0 %v817
      %v1025 = vpop.f32.mrf.mxu0
      %v1026 = vadd.f32 %v785, %v1025
      %1027 = vmatmul.f32.gmra.mxu0 %v820
      %v1028 = vpop.f32.mrf.mxu0
      %v1029 = vadd.f32 %v785, %v1028
      %1030 = vmatmul.f32.gmra.mxu0 %v823
      %v1031 = vpop.f32.mrf.mxu0
      %v1032 = vadd.f32 %v785, %v1031
      %1033 = vmatmul.f32.gmra.mxu0 %v826
      %v1034 = vpop.f32.mrf.mxu0
      %v1035 = vadd.f32 %v785, %v1034
      %1036 = vmatmul.f32.gmra.mxu0 %v829
      %v1037 = vpop.f32.mrf.mxu0
      %v1038 = vadd.f32 %v785, %v1037
      %1039 = vmatmul.f32.gmra.mxu0 %v832
      %v1040 = vpop.f32.mrf.mxu0
      %v1041 = vadd.f32 %v785, %v1040
      %1042 = vmatmul.f32.gmra.mxu0 %v835
      %v1043 = vpop.f32.mrf.mxu0
      %v1044 = vadd.f32 %v785, %v1043
      %1045 = vmatmul.f32.gmra.mxu0 %v838
      %v1046 = vpop.f32.mrf.mxu0
      %v1047 = vadd.f32 %v785, %v1046
      %1048 = vmatmul.f32.gmra.mxu0 %v841
      %v1049 = vpop.f32.mrf.mxu0
      %v1050 = vadd.f32 %v785, %v1049
      %1051 = vmatmul.f32.gmra.mxu0 %v844
      %v1052 = vpop.f32.mrf.mxu0
      %v1053 = vadd.f32 %v785, %v1052
      %1054 = vmatmul.f32.gmra.mxu0 %v847
      %v1055 = vpop.f32.mrf.mxu0
      %v1056 = vadd.f32 %v785, %v1055
      %1057 = vmatmul.f32.gmra.mxu0 %v850
      %v1058 = vpop.f32.mrf.mxu0
      %v1059 = vadd.f32 %v785, %v1058
      %1060 = vmatmul.f32.gmra.mxu0 %v853
      %v1061 = vpop.f32.mrf.mxu0
      %v1062 = vadd.f32 %v785, %v1061
      %1063 = vmatmul.f32.gmra.mxu0 %v856
      %v1064 = vpop.f32.mrf.mxu0
      %v1065 = vadd.f32 %v785, %v1064
      %1066 = vmatmul.f32.gmra.mxu0 %v859
      %v1067 = vpop.f32.mrf.mxu0
      %v1068 = vadd.f32 %v785, %v1067
      %1069 = vmatmul.f32.gmra.mxu0 %v862
      %v1070 = vpop.f32.mrf.mxu0
      %v1071 = vadd.f32 %v785, %v1070
      %1072 = vmatmul.f32.gmra.mxu0 %v865
      %v1073 = vpop.f32.mrf.mxu0
      %v1074 = vadd.f32 %v785, %v1073
      %1075 = vmatmul.f32.gmra.mxu0 %v868
      %v1076 = vpop.f32.mrf.mxu0
      %v1077 = vadd.f32 %v785, %v1076
      %1078 = vmatmul.f32.gmra.mxu0 %v871
      %v1079 = vpop.f32.mrf.mxu0
      %v1080 = vadd.f32 %v785, %v1079
      %1081 = vmatmul.f32.gmra.mxu0 %v874
      %v1082 = vpop.f32.mrf.mxu0
      %v1083 = vadd.f32 %v785, %v1082
      %1084 = vmatmul.f32.gmra.mxu0 %v877
      %v1085 = vpop.f32.mrf.mxu0
      %v1086 = vadd.f32 %v785, %v1085
      %1087 = vmatmul.f32.gmra.mxu0 %v880
      %v1088 = vpop.f32.mrf.mxu0
      %v1089 = vadd.f32 %v785, %v1088
      %1090 = vmatmul.f32.gmra.mxu0 %v883
      %v1091 = vpop.f32.mrf.mxu0
      %v1092 = vadd.f32 %v785, %v1091
      %1093 = vmatmul.f32.gmra.mxu0 %v886
      %v1094 = vpop.f32.mrf.mxu0
      %v1095 = vadd.f32 %v785, %v1094
      %1096 = vmatmul.f32.gmra.mxu0 %v889
      %v1097 = vpop.f32.mrf.mxu0
      %v1098 = vadd.f32 %v785, %v1097
      %1099 = vmatmul.f32.gmra.mxu0 %v892
      %v1100 = vpop.f32.mrf.mxu0
      %v1101 = vadd.f32 %v785, %v1100
      %1102 = vmatmul.f32.gmra.mxu0 %v895
      %v1103 = vpop.f32.mrf.mxu0
      %v1104 = vadd.f32 %v785, %v1103
      %1105 = vmatmul.f32.gmra.mxu0 %v898
      %v1106 = vpop.f32.mrf.mxu0
      %v1107 = vadd.f32 %v785, %v1106
      %1108 = vmatmul.f32.gmra.mxu0 %v901
      %v1109 = vpop.f32.mrf.mxu0
      %v1110 = vadd.f32 %v785, %v1109
      %1111 = vmatmul.f32.gmra.mxu0 %v904
      %v1112 = vpop.f32.mrf.mxu0
      %v1113 = vadd.f32 %v785, %v1112
      %1114 = vmatmul.f32.gmra.mxu0 %v907
      %v1115 = vpop.f32.mrf.mxu0
      %v1116 = vadd.f32 %v785, %v1115
      %1117 = vmatmul.f32.gmra.mxu0 %v910
      %v1118 = vpop.f32.mrf.mxu0
      %v1119 = vadd.f32 %v785, %v1118
      %1120 = vmatmul.f32.gmra.mxu0 %v913
      %v1121 = vpop.f32.mrf.mxu0
      %v1122 = vadd.f32 %v785, %v1121
      %1123 = vmatmul.f32.gmra.mxu0 %v916
      %v1124 = vpop.f32.mrf.mxu0
      %v1125 = vadd.f32 %v785, %v1124
      %1126 = vmatmul.f32.gmra.mxu0 %v919
      %v1127 = vpop.f32.mrf.mxu0
      %v1128 = vadd.f32 %v785, %v1127
      %1129 = vmatmul.f32.gmra.mxu0 %v922
      %v1130 = vpop.f32.mrf.mxu0
      %v1131 = vadd.f32 %v785, %v1130
      %1132 = vmatmul.f32.gmra.mxu0 %v925
      %v1133 = vpop.f32.mrf.mxu0
      %v1134 = vadd.f32 %v785, %v1133
      %1135 = vmatmul.f32.gmra.mxu0 %v928
      %v1136 = vpop.f32.mrf.mxu0
      %v1137 = vadd.f32 %v785, %v1136
      %1138 = vmatmul.f32.gmra.mxu0 %v931
      %v1139 = vpop.f32.mrf.mxu0
      %v1140 = vadd.f32 %v785, %v1139
      %1141 = vmatmul.f32.gmra.mxu0 %v934
      %v1142 = vpop.f32.mrf.mxu0
      %v1143 = vadd.f32 %v785, %v1142
      %1144 = vmatmul.f32.gmra.mxu0 %v937
      %v1145 = vpop.f32.mrf.mxu0
      %v1146 = vadd.f32 %v785, %v1145
      %1147 = vmatmul.f32.gmra.mxu0 %v940
      %v1148 = vpop.f32.mrf.mxu0
      %v1149 = vadd.f32 %v785, %v1148
      %1150 = vmatmul.f32.gmra.mxu0 %v943
      %v1151 = vpop.f32.mrf.mxu0
      %v1152 = vadd.f32 %v785, %v1151
      %1153 = vmatmul.f32.gmra.mxu0 %v946
      %v1154 = vpop.f32.mrf.mxu0
      %v1155 = vadd.f32 %v785, %v1154
      %1156 = vmatmul.f32.gmra.mxu0 %v949
      %v1157 = vpop.f32.mrf.mxu0
      %v1158 = vadd.f32 %v785, %v1157
      %1159 = vmatmul.f32.gmra.mxu0 %v952
      %v1160 = vpop.f32.mrf.mxu0
      %v1161 = vadd.f32 %v785, %v1160
      %1162 = vmatmul.f32.gmra.mxu0 %v955
      %v1163 = vpop.f32.mrf.mxu0
      %v1164 = vadd.f32 %v785, %v1163
      %1165 = vmatmul.f32.gmra.mxu0 %v958
      %v1166 = vpop.f32.mrf.mxu0
      %v1167 = vadd.f32 %v785, %v1166
      %1168 = vmatmul.f32.gmra.mxu0 %v961
      %v1169 = vpop.f32.mrf.mxu0
      %v1170 = vadd.f32 %v785, %v1169
      %1171 = vmatmul.f32.gmra.mxu0 %v964
      %v1172 = vpop.f32.mrf.mxu0
      %v1173 = vadd.f32 %v785, %v1172
      %1174 = vmatmul.f32.gmra.mxu0 %v967
      %v1175 = vpop.f32.mrf.mxu0
      %v1176 = vadd.f32 %v785, %v1175
      %1177 = vmatmul.f32.gmra.mxu0 %v970
      %v1178 = vpop.f32.mrf.mxu0
      %v1179 = vadd.f32 %v785, %v1178
      %1180 = vmatmul.f32.gmra.mxu0 %v973
      %v1181 = vpop.f32.mrf.mxu0
      %v1182 = vadd.f32 %v785, %v1181
      %1183 = vmatmul.f32.gmra.mxu0 %v976
      %v1184 = vpop.f32.mrf.mxu0
      %v1185 = vadd.f32 %v785, %v1184
      %1186 = vdwg.mxu0
      %v1187 = vmax.f32 %v996, 0.0
      %v1188 = vmax.f32 %v999, 0.0
      %v1189 = vmax.f32 %v1002, 0.0
      %v1190 = vmax.f32 %v1005, 0.0
      %v1191 = vmax.f32 %v1008, 0.0
      %v1192 = vmax.f32 %v1011, 0.0
      %v1193 = vmax.f32 %v1014, 0.0
      %v1194 = vmax.f32 %v1017, 0.0
      %v1195 = vmax.f32 %v1020, 0.0
      %v1196 = vmax.f32 %v1023, 0.0
      %v1197 = vmax.f32 %v1026, 0.0
      %v1198 = vmax.f32 %v1029, 0.0
      %v1199 = vmax.f32 %v1032, 0.0
      %v1200 = vmax.f32 %v1035, 0.0
      %v1201 = vmax.f32 %v1038, 0.0
      %v1202 = vmax.f32 %v1041, 0.0
      %v1203 = vmax.f32 %v1044, 0.0
      %v1204 = vmax.f32 %v1047, 0.0
      %v1205 = vmax.f32 %v1050, 0.0
      %v1206 = vmax.f32 %v1053, 0.0
      %v1207 = vmax.f32 %v1056, 0.0
      %v1208 = vmax.f32 %v1059, 0.0
      %v1209 = vmax.f32 %v1062, 0.0
      %v1210 = vmax.f32 %v1065, 0.0
      %v1211 = vmax.f32 %v1068, 0.0
      %v1212 = vmax.f32 %v1071, 0.0
      %v1213 = vmax.f32 %v1074, 0.0
      %v1214 = vmax.f32 %v1077, 0.0
      %v1215 = vmax.f32 %v1080, 0.0
      %v1216 = vmax.f32 %v1083, 0.0
      %v1217 = vmax.f32 %v1086, 0.0
      %v1218 = vmax.f32 %v1089, 0.0
      %v1219 = vmax.f32 %v1092, 0.0
      %v1220 = vmax.f32 %v1095, 0.0
      %v1221 = vmax.f32 %v1098, 0.0
      %v1222 = vmax.f32 %v1101, 0.0
      %v1223 = vmax.f32 %v1104, 0.0
      %v1224 = vmax.f32 %v1107, 0.0
      %v1225 = vmax.f32 %v1110, 0.0
      %v1226 = vmax.f32 %v1113, 0.0
      %v1227 = vmax.f32 %v1116, 0.0
      %v1228 = vmax.f32 %v1119, 0.0
      %v1229 = vmax.f32 %v1122, 0.0
      %v1230 = vmax.f32 %v1125, 0.0
      %v1231 = vmax.f32 %v1128, 0.0
      %v1232 = vmax.f32 %v1131, 0.0
      %v1233 = vmax.f32 %v1134, 0.0
      %v1234 = vmax.f32 %v1137, 0.0
      %v1235 = vmax.f32 %v1140, 0.0
      %v1236 = vmax.f32 %v1143, 0.0
      %v1237 = vmax.f32 %v1146, 0.0
      %v1238 = vmax.f32 %v1149, 0.0
      %v1239 = vmax.f32 %v1152, 0.0
      %v1240 = vmax.f32 %v1155, 0.0
      %v1241 = vmax.f32 %v1158, 0.0
      %v1242 = vmax.f32 %v1161, 0.0
      %v1243 = vmax.f32 %v1164, 0.0
      %v1244 = vmax.f32 %v1167, 0.0
      %v1245 = vmax.f32 %v1170, 0.0
      %v1246 = vmax.f32 %v1173, 0.0
      %v1247 = vmax.f32 %v1176, 0.0
      %v1248 = vmax.f32 %v1179, 0.0
      %v1249 = vmax.f32 %v1182, 0.0
      %v1250 = vmax.f32 %v1185, 0.0
      %v1251 = vperm.slane %v317, 2
      %vm1252 = vcmask 130048
      %v1254 = vsel %vm1252, %v1187, 0
      %v1257 = vsel %vm1252, %v1188, 0
      %v1260 = vsel %vm1252, %v1189, 0
      %v1263 = vsel %vm1252, %v1190, 0
      %v1266 = vsel %vm1252, %v1191, 0
      %v1269 = vsel %vm1252, %v1192, 0
      %v1272 = vsel %vm1252, %v1193, 0
      %v1275 = vsel %vm1252, %v1194, 0
      %v1278 = vsel %vm1252, %v1195, 0
      %v1281 = vsel %vm1252, %v1196, 0
      %v1284 = vsel %vm1252, %v1197, 0
      %v1287 = vsel %vm1252, %v1198, 0
      %v1290 = vsel %vm1252, %v1199, 0
      %v1293 = vsel %vm1252, %v1200, 0
      %v1296 = vsel %vm1252, %v1201, 0
      %v1299 = vsel %vm1252, %v1202, 0
      %v1302 = vsel %vm1252, %v1203, 0
      %v1305 = vsel %vm1252, %v1204, 0
      %v1308 = vsel %vm1252, %v1205, 0
      %v1311 = vsel %vm1252, %v1206, 0
      %v1314 = vsel %vm1252, %v1207, 0
      %v1317 = vsel %vm1252, %v1208, 0
      %v1320 = vsel %vm1252, %v1209, 0
      %v1323 = vsel %vm1252, %v1210, 0
      %v1326 = vsel %vm1252, %v1211, 0
      %v1329 = vsel %vm1252, %v1212, 0
      %v1332 = vsel %vm1252, %v1213, 0
      %v1335 = vsel %vm1252, %v1214, 0
      %v1338 = vsel %vm1252, %v1215, 0
      %v1341 = vsel %vm1252, %v1216, 0
      %v1344 = vsel %vm1252, %v1217, 0
      %v1347 = vsel %vm1252, %v1218, 0
      %v1350 = vsel %vm1252, %v1219, 0
      %v1353 = vsel %vm1252, %v1220, 0
      %v1356 = vsel %vm1252, %v1221, 0
      %v1359 = vsel %vm1252, %v1222, 0
      %v1362 = vsel %vm1252, %v1223, 0
      %v1365 = vsel %vm1252, %v1224, 0
      %v1368 = vsel %vm1252, %v1225, 0
      %v1371 = vsel %vm1252, %v1226, 0
      %v1374 = vsel %vm1252, %v1227, 0
      %v1377 = vsel %vm1252, %v1228, 0
      %v1380 = vsel %vm1252, %v1229, 0
      %v1383 = vsel %vm1252, %v1230, 0
      %v1386 = vsel %vm1252, %v1231, 0
      %v1389 = vsel %vm1252, %v1232, 0
      %v1392 = vsel %vm1252, %v1233, 0
      %v1395 = vsel %vm1252, %v1234, 0
      %v1398 = vsel %vm1252, %v1235, 0
      %v1401 = vsel %vm1252, %v1236, 0
      %v1404 = vsel %vm1252, %v1237, 0
      %v1407 = vsel %vm1252, %v1238, 0
      %v1410 = vsel %vm1252, %v1239, 0
      %v1413 = vsel %vm1252, %v1240, 0
      %v1416 = vsel %vm1252, %v1241, 0
      %v1419 = vsel %vm1252, %v1242, 0
      %v1422 = vsel %vm1252, %v1243, 0
      %v1425 = vsel %vm1252, %v1244, 0
      %v1428 = vsel %vm1252, %v1245, 0
      %v1431 = vsel %vm1252, %v1246, 0
      %v1434 = vsel %vm1252, %v1247, 0
      %v1437 = vsel %vm1252, %v1248, 0
      %v1440 = vsel %vm1252, %v1249, 0
      %v1443 = vsel %vm1252, %v1250, 0
      %1445 = vmatpush.msra.mxu0 0.0
      %1446 = vmatpush.msra.mxu0 0.0
      %1447 = vmatpush.msra.mxu0 0.0
      %1448 = vmatpush.msra.mxu0 0.0
      %1449 = vmatpush.msra.mxu0 0.0
      %1450 = vmatpush.msra.mxu0 0.0
      %1451 = vmatpush.msra.mxu0 0.0
      %1452 = vmatpush.msra.mxu0 0.0
      %1453 = vmatpush.msra.mxu0 0.0
      %1454 = vmatpush.msra.mxu0 0.0
      %1455 = vmatpush.msra.mxu0 0.0
      %1456 = vmatpush.msra.mxu0 0.0
      %1457 = vmatpush.msra.mxu0 0.0
      %1458 = vmatpush.msra.mxu0 0.0
      %1459 = vmatpush.msra.mxu0 %v311
      %1460 = vmatpush.msra.mxu0 %v310
      %1461 = vmatmul.f32.gmra.mxu0 %v1254
      %v1462 = vpop.f32.mrf.mxu0
      %v1463 = vadd.f32 %v1251, %v1462
      %1464 = vmatmul.f32.gmra.mxu0 %v1257
      %v1465 = vpop.f32.mrf.mxu0
      %v1466 = vadd.f32 %v1251, %v1465
      %1467 = vmatmul.f32.gmra.mxu0 %v1260
      %v1468 = vpop.f32.mrf.mxu0
      %v1469 = vadd.f32 %v1251, %v1468
      %1470 = vmatmul.f32.gmra.mxu0 %v1263
      %v1471 = vpop.f32.mrf.mxu0
      %v1472 = vadd.f32 %v1251, %v1471
      %1473 = vmatmul.f32.gmra.mxu0 %v1266
      %v1474 = vpop.f32.mrf.mxu0
      %v1475 = vadd.f32 %v1251, %v1474
      %1476 = vmatmul.f32.gmra.mxu0 %v1269
      %v1477 = vpop.f32.mrf.mxu0
      %v1478 = vadd.f32 %v1251, %v1477
      %1479 = vmatmul.f32.gmra.mxu0 %v1272
      %v1480 = vpop.f32.mrf.mxu0
      %v1481 = vadd.f32 %v1251, %v1480
      %1482 = vmatmul.f32.gmra.mxu0 %v1275
      %v1483 = vpop.f32.mrf.mxu0
      %v1484 = vadd.f32 %v1251, %v1483
      %1485 = vmatmul.f32.gmra.mxu0 %v1278
      %v1486 = vpop.f32.mrf.mxu0
      %v1487 = vadd.f32 %v1251, %v1486
      %1488 = vmatmul.f32.gmra.mxu0 %v1281
      %v1489 = vpop.f32.mrf.mxu0
      %v1490 = vadd.f32 %v1251, %v1489
      %1491 = vmatmul.f32.gmra.mxu0 %v1284
      %v1492 = vpop.f32.mrf.mxu0
      %v1493 = vadd.f32 %v1251, %v1492
      %1494 = vmatmul.f32.gmra.mxu0 %v1287
      %v1495 = vpop.f32.mrf.mxu0
      %v1496 = vadd.f32 %v1251, %v1495
      %1497 = vmatmul.f32.gmra.mxu0 %v1290
      %v1498 = vpop.f32.mrf.mxu0
      %v1499 = vadd.f32 %v1251, %v1498
      %1500 = vmatmul.f32.gmra.mxu0 %v1293
      %v1501 = vpop.f32.mrf.mxu0
      %v1502 = vadd.f32 %v1251, %v1501
      %1503 = vmatmul.f32.gmra.mxu0 %v1296
      %v1504 = vpop.f32.mrf.mxu0
      %v1505 = vadd.f32 %v1251, %v1504
      %1506 = vmatmul.f32.gmra.mxu0 %v1299
      %v1507 = vpop.f32.mrf.mxu0
      %v1508 = vadd.f32 %v1251, %v1507
      %1509 = vmatmul.f32.gmra.mxu0 %v1302
      %v1510 = vpop.f32.mrf.mxu0
      %v1511 = vadd.f32 %v1251, %v1510
      %1512 = vmatmul.f32.gmra.mxu0 %v1305
      %v1513 = vpop.f32.mrf.mxu0
      %v1514 = vadd.f32 %v1251, %v1513
      %1515 = vmatmul.f32.gmra.mxu0 %v1308
      %v1516 = vpop.f32.mrf.mxu0
      %v1517 = vadd.f32 %v1251, %v1516
      %1518 = vmatmul.f32.gmra.mxu0 %v1311
      %v1519 = vpop.f32.mrf.mxu0
      %v1520 = vadd.f32 %v1251, %v1519
      %1521 = vmatmul.f32.gmra.mxu0 %v1314
      %v1522 = vpop.f32.mrf.mxu0
      %v1523 = vadd.f32 %v1251, %v1522
      %1524 = vmatmul.f32.gmra.mxu0 %v1317
      %v1525 = vpop.f32.mrf.mxu0
      %v1526 = vadd.f32 %v1251, %v1525
      %1527 = vmatmul.f32.gmra.mxu0 %v1320
      %v1528 = vpop.f32.mrf.mxu0
      %v1529 = vadd.f32 %v1251, %v1528
      %1530 = vmatmul.f32.gmra.mxu0 %v1323
      %v1531 = vpop.f32.mrf.mxu0
      %v1532 = vadd.f32 %v1251, %v1531
      %1533 = vmatmul.f32.gmra.mxu0 %v1326
      %v1534 = vpop.f32.mrf.mxu0
      %v1535 = vadd.f32 %v1251, %v1534
      %1536 = vmatmul.f32.gmra.mxu0 %v1329
      %v1537 = vpop.f32.mrf.mxu0
      %v1538 = vadd.f32 %v1251, %v1537
      %1539 = vmatmul.f32.gmra.mxu0 %v1332
      %v1540 = vpop.f32.mrf.mxu0
      %v1541 = vadd.f32 %v1251, %v1540
      %1542 = vmatmul.f32.gmra.mxu0 %v1335
      %v1543 = vpop.f32.mrf.mxu0
      %v1544 = vadd.f32 %v1251, %v1543
      %1545 = vmatmul.f32.gmra.mxu0 %v1338
      %v1546 = vpop.f32.mrf.mxu0
      %v1547 = vadd.f32 %v1251, %v1546
      %1548 = vmatmul.f32.gmra.mxu0 %v1341
      %v1549 = vpop.f32.mrf.mxu0
      %v1550 = vadd.f32 %v1251, %v1549
      %1551 = vmatmul.f32.gmra.mxu0 %v1344
      %v1552 = vpop.f32.mrf.mxu0
      %v1553 = vadd.f32 %v1251, %v1552
      %1554 = vmatmul.f32.gmra.mxu0 %v1347
      %v1555 = vpop.f32.mrf.mxu0
      %v1556 = vadd.f32 %v1251, %v1555
      %1557 = vmatmul.f32.gmra.mxu0 %v1350
      %v1558 = vpop.f32.mrf.mxu0
      %v1559 = vadd.f32 %v1251, %v1558
      %1560 = vmatmul.f32.gmra.mxu0 %v1353
      %v1561 = vpop.f32.mrf.mxu0
      %v1562 = vadd.f32 %v1251, %v1561
      %1563 = vmatmul.f32.gmra.mxu0 %v1356
      %v1564 = vpop.f32.mrf.mxu0
      %v1565 = vadd.f32 %v1251, %v1564
      %1566 = vmatmul.f32.gmra.mxu0 %v1359
      %v1567 = vpop.f32.mrf.mxu0
      %v1568 = vadd.f32 %v1251, %v1567
      %1569 = vmatmul.f32.gmra.mxu0 %v1362
      %v1570 = vpop.f32.mrf.mxu0
      %v1571 = vadd.f32 %v1251, %v1570
      %1572 = vmatmul.f32.gmra.mxu0 %v1365
      %v1573 = vpop.f32.mrf.mxu0
      %v1574 = vadd.f32 %v1251, %v1573
      %1575 = vmatmul.f32.gmra.mxu0 %v1368
      %v1576 = vpop.f32.mrf.mxu0
      %v1577 = vadd.f32 %v1251, %v1576
      %1578 = vmatmul.f32.gmra.mxu0 %v1371
      %v1579 = vpop.f32.mrf.mxu0
      %v1580 = vadd.f32 %v1251, %v1579
      %1581 = vmatmul.f32.gmra.mxu0 %v1374
      %v1582 = vpop.f32.mrf.mxu0
      %v1583 = vadd.f32 %v1251, %v1582
      %1584 = vmatmul.f32.gmra.mxu0 %v1377
      %v1585 = vpop.f32.mrf.mxu0
      %v1586 = vadd.f32 %v1251, %v1585
      %1587 = vmatmul.f32.gmra.mxu0 %v1380
      %v1588 = vpop.f32.mrf.mxu0
      %v1589 = vadd.f32 %v1251, %v1588
      %1590 = vmatmul.f32.gmra.mxu0 %v1383
      %v1591 = vpop.f32.mrf.mxu0
      %v1592 = vadd.f32 %v1251, %v1591
      %1593 = vmatmul.f32.gmra.mxu0 %v1386
      %v1594 = vpop.f32.mrf.mxu0
      %v1595 = vadd.f32 %v1251, %v1594
      %1596 = vmatmul.f32.gmra.mxu0 %v1389
      %v1597 = vpop.f32.mrf.mxu0
      %v1598 = vadd.f32 %v1251, %v1597
      %1599 = vmatmul.f32.gmra.mxu0 %v1392
      %v1600 = vpop.f32.mrf.mxu0
      %v1601 = vadd.f32 %v1251, %v1600
      %1602 = vmatmul.f32.gmra.mxu0 %v1395
      %v1603 = vpop.f32.mrf.mxu0
      %v1604 = vadd.f32 %v1251, %v1603
      %1605 = vmatmul.f32.gmra.mxu0 %v1398
      %v1606 = vpop.f32.mrf.mxu0
      %v1607 = vadd.f32 %v1251, %v1606
      %1608 = vmatmul.f32.gmra.mxu0 %v1401
      %v1609 = vpop.f32.mrf.mxu0
      %v1610 = vadd.f32 %v1251, %v1609
      %1611 = vmatmul.f32.gmra.mxu0 %v1404
      %v1612 = vpop.f32.mrf.mxu0
      %v1613 = vadd.f32 %v1251, %v1612
      %1614 = vmatmul.f32.gmra.mxu0 %v1407
      %v1615 = vpop.f32.mrf.mxu0
      %v1616 = vadd.f32 %v1251, %v1615
      %1617 = vmatmul.f32.gmra.mxu0 %v1410
      %v1618 = vpop.f32.mrf.mxu0
      %v1619 = vadd.f32 %v1251, %v1618
      %1620 = vmatmul.f32.gmra.mxu0 %v1413
      %v1621 = vpop.f32.mrf.mxu0
      %v1622 = vadd.f32 %v1251, %v1621
      %1623 = vmatmul.f32.gmra.mxu0 %v1416
      %v1624 = vpop.f32.mrf.mxu0
      %v1625 = vadd.f32 %v1251, %v1624
      %1626 = vmatmul.f32.gmra.mxu0 %v1419
      %v1627 = vpop.f32.mrf.mxu0
      %v1628 = vadd.f32 %v1251, %v1627
      %1629 = vmatmul.f32.gmra.mxu0 %v1422
      %v1630 = vpop.f32.mrf.mxu0
      %v1631 = vadd.f32 %v1251, %v1630
      %1632 = vmatmul.f32.gmra.mxu0 %v1425
      %v1633 = vpop.f32.mrf.mxu0
      %v1634 = vadd.f32 %v1251, %v1633
      %1635 = vmatmul.f32.gmra.mxu0 %v1428
      %v1636 = vpop.f32.mrf.mxu0
      %v1637 = vadd.f32 %v1251, %v1636
      %1638 = vmatmul.f32.gmra.mxu0 %v1431
      %v1639 = vpop.f32.mrf.mxu0
      %v1640 = vadd.f32 %v1251, %v1639
      %1641 = vmatmul.f32.gmra.mxu0 %v1434
      %v1642 = vpop.f32.mrf.mxu0
      %v1643 = vadd.f32 %v1251, %v1642
      %1644 = vmatmul.f32.gmra.mxu0 %v1437
      %v1645 = vpop.f32.mrf.mxu0
      %v1646 = vadd.f32 %v1251, %v1645
      %1647 = vmatmul.f32.gmra.mxu0 %v1440
      %v1648 = vpop.f32.mrf.mxu0
      %v1649 = vadd.f32 %v1251, %v1648
      %1650 = vmatmul.f32.gmra.mxu0 %v1443
      %v1651 = vpop.f32.mrf.mxu0
      %v1652 = vadd.f32 %v1251, %v1651
      %1653 = vdwg.mxu0
      %v1654 = vmax.f32 %v1463, 0.0
      %v1655 = vmax.f32 %v1466, 0.0
      %v1656 = vmax.f32 %v1469, 0.0
      %v1657 = vmax.f32 %v1472, 0.0
      %v1658 = vmax.f32 %v1475, 0.0
      %v1659 = vmax.f32 %v1478, 0.0
      %v1660 = vmax.f32 %v1481, 0.0
      %v1661 = vmax.f32 %v1484, 0.0
      %v1662 = vmax.f32 %v1487, 0.0
      %v1663 = vmax.f32 %v1490, 0.0
      %v1664 = vmax.f32 %v1493, 0.0
      %v1665 = vmax.f32 %v1496, 0.0
      %v1666 = vmax.f32 %v1499, 0.0
      %v1667 = vmax.f32 %v1502, 0.0
      %v1668 = vmax.f32 %v1505, 0.0
      %v1669 = vmax.f32 %v1508, 0.0
      %v1670 = vmax.f32 %v1511, 0.0
      %v1671 = vmax.f32 %v1514, 0.0
      %v1672 = vmax.f32 %v1517, 0.0
      %v1673 = vmax.f32 %v1520, 0.0
      %v1674 = vmax.f32 %v1523, 0.0
      %v1675 = vmax.f32 %v1526, 0.0
      %v1676 = vmax.f32 %v1529, 0.0
      %v1677 = vmax.f32 %v1532, 0.0
      %v1678 = vmax.f32 %v1535, 0.0
      %v1679 = vmax.f32 %v1538, 0.0
      %v1680 = vmax.f32 %v1541, 0.0
      %v1681 = vmax.f32 %v1544, 0.0
      %v1682 = vmax.f32 %v1547, 0.0
      %v1683 = vmax.f32 %v1550, 0.0
      %v1684 = vmax.f32 %v1553, 0.0
      %v1685 = vmax.f32 %v1556, 0.0
      %v1686 = vmax.f32 %v1559, 0.0
      %v1687 = vmax.f32 %v1562, 0.0
      %v1688 = vmax.f32 %v1565, 0.0
      %v1689 = vmax.f32 %v1568, 0.0
      %v1690 = vmax.f32 %v1571, 0.0
      %v1691 = vmax.f32 %v1574, 0.0
      %v1692 = vmax.f32 %v1577, 0.0
      %v1693 = vmax.f32 %v1580, 0.0
      %v1694 = vmax.f32 %v1583, 0.0
      %v1695 = vmax.f32 %v1586, 0.0
      %v1696 = vmax.f32 %v1589, 0.0
      %v1697 = vmax.f32 %v1592, 0.0
      %v1698 = vmax.f32 %v1595, 0.0
      %v1699 = vmax.f32 %v1598, 0.0
      %v1700 = vmax.f32 %v1601, 0.0
      %v1701 = vmax.f32 %v1604, 0.0
      %v1702 = vmax.f32 %v1607, 0.0
      %v1703 = vmax.f32 %v1610, 0.0
      %v1704 = vmax.f32 %v1613, 0.0
      %v1705 = vmax.f32 %v1616, 0.0
      %v1706 = vmax.f32 %v1619, 0.0
      %v1707 = vmax.f32 %v1622, 0.0
      %v1708 = vmax.f32 %v1625, 0.0
      %v1709 = vmax.f32 %v1628, 0.0
      %v1710 = vmax.f32 %v1631, 0.0
      %v1711 = vmax.f32 %v1634, 0.0
      %v1712 = vmax.f32 %v1637, 0.0
      %v1713 = vmax.f32 %v1640, 0.0
      %v1714 = vmax.f32 %v1643, 0.0
      %v1715 = vmax.f32 %v1646, 0.0
      %v1716 = vmax.f32 %v1649, 0.0
      %v1717 = vmax.f32 %v1652, 0.0
      %v1718 = vperm.slane %v317, 3
      %vm1719 = vcmask 64512
      %v1721 = vsel %vm1719, %v1654, 0
      %v1724 = vsel %vm1719, %v1655, 0
      %v1727 = vsel %vm1719, %v1656, 0
      %v1730 = vsel %vm1719, %v1657, 0
      %v1733 = vsel %vm1719, %v1658, 0
      %v1736 = vsel %vm1719, %v1659, 0
      %v1739 = vsel %vm1719, %v1660, 0
      %v1742 = vsel %vm1719, %v1661, 0
      %v1745 = vsel %vm1719, %v1662, 0
      %v1748 = vsel %vm1719, %v1663, 0
      %v1751 = vsel %vm1719, %v1664, 0
      %v1754 = vsel %vm1719, %v1665, 0
      %v1757 = vsel %vm1719, %v1666, 0
      %v1760 = vsel %vm1719, %v1667, 0
      %v1763 = vsel %vm1719, %v1668, 0
      %v1766 = vsel %vm1719, %v1669, 0
      %v1769 = vsel %vm1719, %v1670, 0
      %v1772 = vsel %vm1719, %v1671, 0
      %v1775 = vsel %vm1719, %v1672, 0
      %v1778 = vsel %vm1719, %v1673, 0
      %v1781 = vsel %vm1719, %v1674, 0
      %v1784 = vsel %vm1719, %v1675, 0
      %v1787 = vsel %vm1719, %v1676, 0
      %v1790 = vsel %vm1719, %v1677, 0
      %v1793 = vsel %vm1719, %v1678, 0
      %v1796 = vsel %vm1719, %v1679, 0
      %v1799 = vsel %vm1719, %v1680, 0
      %v1802 = vsel %vm1719, %v1681, 0
      %v1805 = vsel %vm1719, %v1682, 0
      %v1808 = vsel %vm1719, %v1683, 0
      %v1811 = vsel %vm1719, %v1684, 0
      %v1814 = vsel %vm1719, %v1685, 0
      %v1817 = vsel %vm1719, %v1686, 0
      %v1820 = vsel %vm1719, %v1687, 0
      %v1823 = vsel %vm1719, %v1688, 0
      %v1826 = vsel %vm1719, %v1689, 0
      %v1829 = vsel %vm1719, %v1690, 0
      %v1832 = vsel %vm1719, %v1691, 0
      %v1835 = vsel %vm1719, %v1692, 0
      %v1838 = vsel %vm1719, %v1693, 0
      %v1841 = vsel %vm1719, %v1694, 0
      %v1844 = vsel %vm1719, %v1695, 0
      %v1847 = vsel %vm1719, %v1696, 0
      %v1850 = vsel %vm1719, %v1697, 0
      %v1853 = vsel %vm1719, %v1698, 0
      %v1856 = vsel %vm1719, %v1699, 0
      %v1859 = vsel %vm1719, %v1700, 0
      %v1862 = vsel %vm1719, %v1701, 0
      %v1865 = vsel %vm1719, %v1702, 0
      %v1868 = vsel %vm1719, %v1703, 0
      %v1871 = vsel %vm1719, %v1704, 0
      %v1874 = vsel %vm1719, %v1705, 0
      %v1877 = vsel %vm1719, %v1706, 0
      %v1880 = vsel %vm1719, %v1707, 0
      %v1883 = vsel %vm1719, %v1708, 0
      %v1886 = vsel %vm1719, %v1709, 0
      %v1889 = vsel %vm1719, %v1710, 0
      %v1892 = vsel %vm1719, %v1711, 0
      %v1895 = vsel %vm1719, %v1712, 0
      %v1898 = vsel %vm1719, %v1713, 0
      %v1901 = vsel %vm1719, %v1714, 0
      %v1904 = vsel %vm1719, %v1715, 0
      %v1907 = vsel %vm1719, %v1716, 0
      %v1910 = vsel %vm1719, %v1717, 0
      %1912 = vmatpush.msra.mxu0 0.0
      %1913 = vmatpush.msra.mxu0 0.0
      %1914 = vmatpush.msra.mxu0 0.0
      %1915 = vmatpush.msra.mxu0 0.0
      %1916 = vmatpush.msra.mxu0 0.0
      %1917 = vmatpush.msra.mxu0 0.0
      %1918 = vmatpush.msra.mxu0 0.0
      %1919 = vmatpush.msra.mxu0 0.0
      %1920 = vmatpush.msra.mxu0 0.0
      %1921 = vmatpush.msra.mxu0 0.0
      %1922 = vmatpush.msra.mxu0 0.0
      %1923 = vmatpush.msra.mxu0 0.0
      %1924 = vmatpush.msra.mxu0 0.0
      %1925 = vmatpush.msra.mxu0 0.0
      %1926 = vmatpush.msra.mxu0 0.0
      %1927 = vmatpush.msra.mxu0 %v312
      %1928 = vmatmul.f32.gmra.mxu0 %v1721
      %v1929 = vpop.f32.mrf.mxu0
      %v1930 = vadd.f32 %v1718, %v1929
      %1931 = vmatmul.f32.gmra.mxu0 %v1724
      %v1932 = vpop.f32.mrf.mxu0
      %v1933 = vadd.f32 %v1718, %v1932
      %1934 = vmatmul.f32.gmra.mxu0 %v1727
      %v1935 = vpop.f32.mrf.mxu0
      %v1936 = vadd.f32 %v1718, %v1935
      %1937 = vmatmul.f32.gmra.mxu0 %v1730
      %v1938 = vpop.f32.mrf.mxu0
      %v1939 = vadd.f32 %v1718, %v1938
      %1940 = vmatmul.f32.gmra.mxu0 %v1733
      %v1941 = vpop.f32.mrf.mxu0
      %v1942 = vadd.f32 %v1718, %v1941
      %1943 = vmatmul.f32.gmra.mxu0 %v1736
      %v1944 = vpop.f32.mrf.mxu0
      %v1945 = vadd.f32 %v1718, %v1944
      %1946 = vmatmul.f32.gmra.mxu0 %v1739
      %v1947 = vpop.f32.mrf.mxu0
      %v1948 = vadd.f32 %v1718, %v1947
      %1949 = vmatmul.f32.gmra.mxu0 %v1742
      %v1950 = vpop.f32.mrf.mxu0
      %v1951 = vadd.f32 %v1718, %v1950
      %1952 = vmatmul.f32.gmra.mxu0 %v1745
      %v1953 = vpop.f32.mrf.mxu0
      %v1954 = vadd.f32 %v1718, %v1953
      %1955 = vmatmul.f32.gmra.mxu0 %v1748
      %v1956 = vpop.f32.mrf.mxu0
      %v1957 = vadd.f32 %v1718, %v1956
      %1958 = vmatmul.f32.gmra.mxu0 %v1751
      %v1959 = vpop.f32.mrf.mxu0
      %v1960 = vadd.f32 %v1718, %v1959
      %1961 = vmatmul.f32.gmra.mxu0 %v1754
      %v1962 = vpop.f32.mrf.mxu0
      %v1963 = vadd.f32 %v1718, %v1962
      %1964 = vmatmul.f32.gmra.mxu0 %v1757
      %v1965 = vpop.f32.mrf.mxu0
      %v1966 = vadd.f32 %v1718, %v1965
      %1967 = vmatmul.f32.gmra.mxu0 %v1760
      %v1968 = vpop.f32.mrf.mxu0
      %v1969 = vadd.f32 %v1718, %v1968
      %1970 = vmatmul.f32.gmra.mxu0 %v1763
      %v1971 = vpop.f32.mrf.mxu0
      %v1972 = vadd.f32 %v1718, %v1971
      %1973 = vmatmul.f32.gmra.mxu0 %v1766
      %v1974 = vpop.f32.mrf.mxu0
      %v1975 = vadd.f32 %v1718, %v1974
      %1976 = vmatmul.f32.gmra.mxu0 %v1769
      %v1977 = vpop.f32.mrf.mxu0
      %v1978 = vadd.f32 %v1718, %v1977
      %1979 = vmatmul.f32.gmra.mxu0 %v1772
      %v1980 = vpop.f32.mrf.mxu0
      %v1981 = vadd.f32 %v1718, %v1980
      %1982 = vmatmul.f32.gmra.mxu0 %v1775
      %v1983 = vpop.f32.mrf.mxu0
      %v1984 = vadd.f32 %v1718, %v1983
      %1985 = vmatmul.f32.gmra.mxu0 %v1778
      %v1986 = vpop.f32.mrf.mxu0
      %v1987 = vadd.f32 %v1718, %v1986
      %1988 = vmatmul.f32.gmra.mxu0 %v1781
      %v1989 = vpop.f32.mrf.mxu0
      %v1990 = vadd.f32 %v1718, %v1989
      %1991 = vmatmul.f32.gmra.mxu0 %v1784
      %v1992 = vpop.f32.mrf.mxu0
      %v1993 = vadd.f32 %v1718, %v1992
      %1994 = vmatmul.f32.gmra.mxu0 %v1787
      %v1995 = vpop.f32.mrf.mxu0
      %v1996 = vadd.f32 %v1718, %v1995
      %1997 = vmatmul.f32.gmra.mxu0 %v1790
      %v1998 = vpop.f32.mrf.mxu0
      %v1999 = vadd.f32 %v1718, %v1998
      %2000 = vmatmul.f32.gmra.mxu0 %v1793
      %v2001 = vpop.f32.mrf.mxu0
      %v2002 = vadd.f32 %v1718, %v2001
      %2003 = vmatmul.f32.gmra.mxu0 %v1796
      %v2004 = vpop.f32.mrf.mxu0
      %v2005 = vadd.f32 %v1718, %v2004
      %2006 = vmatmul.f32.gmra.mxu0 %v1799
      %v2007 = vpop.f32.mrf.mxu0
      %v2008 = vadd.f32 %v1718, %v2007
      %2009 = vmatmul.f32.gmra.mxu0 %v1802
      %v2010 = vpop.f32.mrf.mxu0
      %v2011 = vadd.f32 %v1718, %v2010
      %2012 = vmatmul.f32.gmra.mxu0 %v1805
      %v2013 = vpop.f32.mrf.mxu0
      %v2014 = vadd.f32 %v1718, %v2013
      %2015 = vmatmul.f32.gmra.mxu0 %v1808
      %v2016 = vpop.f32.mrf.mxu0
      %v2017 = vadd.f32 %v1718, %v2016
      %2018 = vmatmul.f32.gmra.mxu0 %v1811
      %v2019 = vpop.f32.mrf.mxu0
      %v2020 = vadd.f32 %v1718, %v2019
      %2021 = vmatmul.f32.gmra.mxu0 %v1814
      %v2022 = vpop.f32.mrf.mxu0
      %v2023 = vadd.f32 %v1718, %v2022
      %2024 = vmatmul.f32.gmra.mxu0 %v1817
      %v2025 = vpop.f32.mrf.mxu0
      %v2026 = vadd.f32 %v1718, %v2025
      %2027 = vmatmul.f32.gmra.mxu0 %v1820
      %v2028 = vpop.f32.mrf.mxu0
      %v2029 = vadd.f32 %v1718, %v2028
      %2030 = vmatmul.f32.gmra.mxu0 %v1823
      %v2031 = vpop.f32.mrf.mxu0
      %v2032 = vadd.f32 %v1718, %v2031
      %2033 = vmatmul.f32.gmra.mxu0 %v1826
      %v2034 = vpop.f32.mrf.mxu0
      %v2035 = vadd.f32 %v1718, %v2034
      %2036 = vmatmul.f32.gmra.mxu0 %v1829
      %v2037 = vpop.f32.mrf.mxu0
      %v2038 = vadd.f32 %v1718, %v2037
      %2039 = vmatmul.f32.gmra.mxu0 %v1832
      %v2040 = vpop.f32.mrf.mxu0
      %v2041 = vadd.f32 %v1718, %v2040
      %2042 = vmatmul.f32.gmra.mxu0 %v1835
      %v2043 = vpop.f32.mrf.mxu0
      %v2044 = vadd.f32 %v1718, %v2043
      %2045 = vmatmul.f32.gmra.mxu0 %v1838
      %v2046 = vpop.f32.mrf.mxu0
      %v2047 = vadd.f32 %v1718, %v2046
      %2048 = vmatmul.f32.gmra.mxu0 %v1841
      %v2049 = vpop.f32.mrf.mxu0
      %v2050 = vadd.f32 %v1718, %v2049
      %2051 = vmatmul.f32.gmra.mxu0 %v1844
      %v2052 = vpop.f32.mrf.mxu0
      %v2053 = vadd.f32 %v1718, %v2052
      %2054 = vmatmul.f32.gmra.mxu0 %v1847
      %v2055 = vpop.f32.mrf.mxu0
      %v2056 = vadd.f32 %v1718, %v2055
      %2057 = vmatmul.f32.gmra.mxu0 %v1850
      %v2058 = vpop.f32.mrf.mxu0
      %v2059 = vadd.f32 %v1718, %v2058
      %2060 = vmatmul.f32.gmra.mxu0 %v1853
      %v2061 = vpop.f32.mrf.mxu0
      %v2062 = vadd.f32 %v1718, %v2061
      %2063 = vmatmul.f32.gmra.mxu0 %v1856
      %v2064 = vpop.f32.mrf.mxu0
      %v2065 = vadd.f32 %v1718, %v2064
      %2066 = vmatmul.f32.gmra.mxu0 %v1859
      %v2067 = vpop.f32.mrf.mxu0
      %v2068 = vadd.f32 %v1718, %v2067
      %2069 = vmatmul.f32.gmra.mxu0 %v1862
      %v2070 = vpop.f32.mrf.mxu0
      %v2071 = vadd.f32 %v1718, %v2070
      %2072 = vmatmul.f32.gmra.mxu0 %v1865
      %v2073 = vpop.f32.mrf.mxu0
      %v2074 = vadd.f32 %v1718, %v2073
      %2075 = vmatmul.f32.gmra.mxu0 %v1868
      %v2076 = vpop.f32.mrf.mxu0
      %v2077 = vadd.f32 %v1718, %v2076
      %2078 = vmatmul.f32.gmra.mxu0 %v1871
      %v2079 = vpop.f32.mrf.mxu0
      %v2080 = vadd.f32 %v1718, %v2079
      %2081 = vmatmul.f32.gmra.mxu0 %v1874
      %v2082 = vpop.f32.mrf.mxu0
      %v2083 = vadd.f32 %v1718, %v2082
      %2084 = vmatmul.f32.gmra.mxu0 %v1877
      %v2085 = vpop.f32.mrf.mxu0
      %v2086 = vadd.f32 %v1718, %v2085
      %2087 = vmatmul.f32.gmra.mxu0 %v1880
      %v2088 = vpop.f32.mrf.mxu0
      %v2089 = vadd.f32 %v1718, %v2088
      %2090 = vmatmul.f32.gmra.mxu0 %v1883
      %v2091 = vpop.f32.mrf.mxu0
      %v2092 = vadd.f32 %v1718, %v2091
      %2093 = vmatmul.f32.gmra.mxu0 %v1886
      %v2094 = vpop.f32.mrf.mxu0
      %v2095 = vadd.f32 %v1718, %v2094
      %2096 = vmatmul.f32.gmra.mxu0 %v1889
      %v2097 = vpop.f32.mrf.mxu0
      %v2098 = vadd.f32 %v1718, %v2097
      %2099 = vmatmul.f32.gmra.mxu0 %v1892
      %v2100 = vpop.f32.mrf.mxu0
      %v2101 = vadd.f32 %v1718, %v2100
      %2102 = vmatmul.f32.gmra.mxu0 %v1895
      %v2103 = vpop.f32.mrf.mxu0
      %v2104 = vadd.f32 %v1718, %v2103
      %2105 = vmatmul.f32.gmra.mxu0 %v1898
      %v2106 = vpop.f32.mrf.mxu0
      %v2107 = vadd.f32 %v1718, %v2106
      %2108 = vmatmul.f32.gmra.mxu0 %v1901
      %v2109 = vpop.f32.mrf.mxu0
      %v2110 = vadd.f32 %v1718, %v2109
      %2111 = vmatmul.f32.gmra.mxu0 %v1904
      %v2112 = vpop.f32.mrf.mxu0
      %v2113 = vadd.f32 %v1718, %v2112
      %2114 = vmatmul.f32.gmra.mxu0 %v1907
      %v2115 = vpop.f32.mrf.mxu0
      %v2116 = vadd.f32 %v1718, %v2115
      %2117 = vmatmul.f32.gmra.mxu0 %v1910
      %v2118 = vpop.f32.mrf.mxu0
      %v2119 = vadd.f32 %v1718, %v2118
      %2120 = vdwg.mxu0
      %v2121 = vmax.f32 %v1930, 0.0
      %v2122 = vmax.f32 %v1933, 0.0
      %v2123 = vmax.f32 %v1936, 0.0
      %v2124 = vmax.f32 %v1939, 0.0
      %v2125 = vmax.f32 %v1942, 0.0
      %v2126 = vmax.f32 %v1945, 0.0
      %v2127 = vmax.f32 %v1948, 0.0
      %v2128 = vmax.f32 %v1951, 0.0
      %v2129 = vmax.f32 %v1954, 0.0
      %v2130 = vmax.f32 %v1957, 0.0
      %v2131 = vmax.f32 %v1960, 0.0
      %v2132 = vmax.f32 %v1963, 0.0
      %v2133 = vmax.f32 %v1966, 0.0
      %v2134 = vmax.f32 %v1969, 0.0
      %v2135 = vmax.f32 %v1972, 0.0
      %v2136 = vmax.f32 %v1975, 0.0
      %v2137 = vmax.f32 %v1978, 0.0
      %v2138 = vmax.f32 %v1981, 0.0
      %v2139 = vmax.f32 %v1984, 0.0
      %v2140 = vmax.f32 %v1987, 0.0
      %v2141 = vmax.f32 %v1990, 0.0
      %v2142 = vmax.f32 %v1993, 0.0
      %v2143 = vmax.f32 %v1996, 0.0
      %v2144 = vmax.f32 %v1999, 0.0
      %v2145 = vmax.f32 %v2002, 0.0
      %v2146 = vmax.f32 %v2005, 0.0
      %v2147 = vmax.f32 %v2008, 0.0
      %v2148 = vmax.f32 %v2011, 0.0
      %v2149 = vmax.f32 %v2014, 0.0
      %v2150 = vmax.f32 %v2017, 0.0
      %v2151 = vmax.f32 %v2020, 0.0
      %v2152 = vmax.f32 %v2023, 0.0
      %v2153 = vmax.f32 %v2026, 0.0
      %v2154 = vmax.f32 %v2029, 0.0
      %v2155 = vmax.f32 %v2032, 0.0
      %v2156 = vmax.f32 %v2035, 0.0
      %v2157 = vmax.f32 %v2038, 0.0
      %v2158 = vmax.f32 %v2041, 0.0
      %v2159 = vmax.f32 %v2044, 0.0
      %v2160 = vmax.f32 %v2047, 0.0
      %v2161 = vmax.f32 %v2050, 0.0
      %v2162 = vmax.f32 %v2053, 0.0
      %v2163 = vmax.f32 %v2056, 0.0
      %v2164 = vmax.f32 %v2059, 0.0
      %v2165 = vmax.f32 %v2062, 0.0
      %v2166 = vmax.f32 %v2065, 0.0
      %v2167 = vmax.f32 %v2068, 0.0
      %v2168 = vmax.f32 %v2071, 0.0
      %v2169 = vmax.f32 %v2074, 0.0
      %v2170 = vmax.f32 %v2077, 0.0
      %v2171 = vmax.f32 %v2080, 0.0
      %v2172 = vmax.f32 %v2083, 0.0
      %v2173 = vmax.f32 %v2086, 0.0
      %v2174 = vmax.f32 %v2089, 0.0
      %v2175 = vmax.f32 %v2092, 0.0
      %v2176 = vmax.f32 %v2095, 0.0
      %v2177 = vmax.f32 %v2098, 0.0
      %v2178 = vmax.f32 %v2101, 0.0
      %v2179 = vmax.f32 %v2104, 0.0
      %v2180 = vmax.f32 %v2107, 0.0
      %v2181 = vmax.f32 %v2110, 0.0
      %v2182 = vmax.f32 %v2113, 0.0
      %v2183 = vmax.f32 %v2116, 0.0
      %v2184 = vmax.f32 %v2119, 0.0
      %v2185 = vperm.slane %v317, 4
      %vm2186 = vcmask 31744
      %v2188 = vsel %vm2186, %v2121, 0
      %v2191 = vsel %vm2186, %v2122, 0
      %v2194 = vsel %vm2186, %v2123, 0
      %v2197 = vsel %vm2186, %v2124, 0
      %v2200 = vsel %vm2186, %v2125, 0
      %v2203 = vsel %vm2186, %v2126, 0
      %v2206 = vsel %vm2186, %v2127, 0
      %v2209 = vsel %vm2186, %v2128, 0
      %v2212 = vsel %vm2186, %v2129, 0
      %v2215 = vsel %vm2186, %v2130, 0
      %v2218 = vsel %vm2186, %v2131, 0
      %v2221 = vsel %vm2186, %v2132, 0
      %v2224 = vsel %vm2186, %v2133, 0
      %v2227 = vsel %vm2186, %v2134, 0
      %v2230 = vsel %vm2186, %v2135, 0
      %v2233 = vsel %vm2186, %v2136, 0
      %v2236 = vsel %vm2186, %v2137, 0
      %v2239 = vsel %vm2186, %v2138, 0
      %v2242 = vsel %vm2186, %v2139, 0
      %v2245 = vsel %vm2186, %v2140, 0
      %v2248 = vsel %vm2186, %v2141, 0
      %v2251 = vsel %vm2186, %v2142, 0
      %v2254 = vsel %vm2186, %v2143, 0
      %v2257 = vsel %vm2186, %v2144, 0
      %v2260 = vsel %vm2186, %v2145, 0
      %v2263 = vsel %vm2186, %v2146, 0
      %v2266 = vsel %vm2186, %v2147, 0
      %v2269 = vsel %vm2186, %v2148, 0
      %v2272 = vsel %vm2186, %v2149, 0
      %v2275 = vsel %vm2186, %v2150, 0
      %v2278 = vsel %vm2186, %v2151, 0
      %v2281 = vsel %vm2186, %v2152, 0
      %v2284 = vsel %vm2186, %v2153, 0
      %v2287 = vsel %vm2186, %v2154, 0
      %v2290 = vsel %vm2186, %v2155, 0
      %v2293 = vsel %vm2186, %v2156, 0
      %v2296 = vsel %vm2186, %v2157, 0
      %v2299 = vsel %vm2186, %v2158, 0
      %v2302 = vsel %vm2186, %v2159, 0
      %v2305 = vsel %vm2186, %v2160, 0
      %v2308 = vsel %vm2186, %v2161, 0
      %v2311 = vsel %vm2186, %v2162, 0
      %v2314 = vsel %vm2186, %v2163, 0
      %v2317 = vsel %vm2186, %v2164, 0
      %v2320 = vsel %vm2186, %v2165, 0
      %v2323 = vsel %vm2186, %v2166, 0
      %v2326 = vsel %vm2186, %v2167, 0
      %v2329 = vsel %vm2186, %v2168, 0
      %v2332 = vsel %vm2186, %v2169, 0
      %v2335 = vsel %vm2186, %v2170, 0
      %v2338 = vsel %vm2186, %v2171, 0
      %v2341 = vsel %vm2186, %v2172, 0
      %v2344 = vsel %vm2186, %v2173, 0
      %v2347 = vsel %vm2186, %v2174, 0
      %v2350 = vsel %vm2186, %v2175, 0
      %v2353 = vsel %vm2186, %v2176, 0
      %v2356 = vsel %vm2186, %v2177, 0
      %v2359 = vsel %vm2186, %v2178, 0
      %v2362 = vsel %vm2186, %v2179, 0
      %v2365 = vsel %vm2186, %v2180, 0
      %v2368 = vsel %vm2186, %v2181, 0
      %v2371 = vsel %vm2186, %v2182, 0
      %v2374 = vsel %vm2186, %v2183, 0
      %v2377 = vsel %vm2186, %v2184, 0
      %vm2379 = vcmask 1043456
      %v2381 = vsel %vm2379, %v313, 0
      %2383 = vmatpush.msra.mxu0 0.0
      %2384 = vmatpush.msra.mxu0 0.0
      %2385 = vmatpush.msra.mxu0 0.0
      %2386 = vmatpush.msra.mxu0 0.0
      %2387 = vmatpush.msra.mxu0 0.0
      %2388 = vmatpush.msra.mxu0 0.0
      %2389 = vmatpush.msra.mxu0 0.0
      %2390 = vmatpush.msra.mxu0 0.0
      %2391 = vmatpush.msra.mxu0 0.0
      %2392 = vmatpush.msra.mxu0 0.0
      %2393 = vmatpush.msra.mxu0 0.0
      %2394 = vmatpush.msra.mxu0 0.0
      %2395 = vmatpush.msra.mxu0 0.0
      %2396 = vmatpush.msra.mxu0 0.0
      %2397 = vmatpush.msra.mxu0 0.0
      %2398 = vmatpush.msra.mxu0 %v2381
      %2399 = vmatmul.f32.gmra.mxu0 %v2188
      %v2400 = vpop.f32.mrf.mxu0
      %v2401 = vadd.f32 %v2185, %v2400
      %2402 = vmatmul.f32.gmra.mxu0 %v2191
      %v2403 = vpop.f32.mrf.mxu0
      %v2404 = vadd.f32 %v2185, %v2403
      %2405 = vmatmul.f32.gmra.mxu0 %v2194
      %v2406 = vpop.f32.mrf.mxu0
      %v2407 = vadd.f32 %v2185, %v2406
      %2408 = vmatmul.f32.gmra.mxu0 %v2197
      %v2409 = vpop.f32.mrf.mxu0
      %v2410 = vadd.f32 %v2185, %v2409
      %2411 = vmatmul.f32.gmra.mxu0 %v2200
      %v2412 = vpop.f32.mrf.mxu0
      %v2413 = vadd.f32 %v2185, %v2412
      %2414 = vmatmul.f32.gmra.mxu0 %v2203
      %v2415 = vpop.f32.mrf.mxu0
      %v2416 = vadd.f32 %v2185, %v2415
      %2417 = vmatmul.f32.gmra.mxu0 %v2206
      %v2418 = vpop.f32.mrf.mxu0
      %v2419 = vadd.f32 %v2185, %v2418
      %2420 = vmatmul.f32.gmra.mxu0 %v2209
      %v2421 = vpop.f32.mrf.mxu0
      %v2422 = vadd.f32 %v2185, %v2421
      %2423 = vmatmul.f32.gmra.mxu0 %v2212
      %v2424 = vpop.f32.mrf.mxu0
      %v2425 = vadd.f32 %v2185, %v2424
      %2426 = vmatmul.f32.gmra.mxu0 %v2215
      %v2427 = vpop.f32.mrf.mxu0
      %v2428 = vadd.f32 %v2185, %v2427
      %2429 = vmatmul.f32.gmra.mxu0 %v2218
      %v2430 = vpop.f32.mrf.mxu0
      %v2431 = vadd.f32 %v2185, %v2430
      %2432 = vmatmul.f32.gmra.mxu0 %v2221
      %v2433 = vpop.f32.mrf.mxu0
      %v2434 = vadd.f32 %v2185, %v2433
      %2435 = vmatmul.f32.gmra.mxu0 %v2224
      %v2436 = vpop.f32.mrf.mxu0
      %v2437 = vadd.f32 %v2185, %v2436
      %2438 = vmatmul.f32.gmra.mxu0 %v2227
      %v2439 = vpop.f32.mrf.mxu0
      %v2440 = vadd.f32 %v2185, %v2439
      %2441 = vmatmul.f32.gmra.mxu0 %v2230
      %v2442 = vpop.f32.mrf.mxu0
      %v2443 = vadd.f32 %v2185, %v2442
      %2444 = vmatmul.f32.gmra.mxu0 %v2233
      %v2445 = vpop.f32.mrf.mxu0
      %v2446 = vadd.f32 %v2185, %v2445
      %2447 = vmatmul.f32.gmra.mxu0 %v2236
      %v2448 = vpop.f32.mrf.mxu0
      %v2449 = vadd.f32 %v2185, %v2448
      %2450 = vmatmul.f32.gmra.mxu0 %v2239
      %v2451 = vpop.f32.mrf.mxu0
      %v2452 = vadd.f32 %v2185, %v2451
      %2453 = vmatmul.f32.gmra.mxu0 %v2242
      %v2454 = vpop.f32.mrf.mxu0
      %v2455 = vadd.f32 %v2185, %v2454
      %2456 = vmatmul.f32.gmra.mxu0 %v2245
      %v2457 = vpop.f32.mrf.mxu0
      %v2458 = vadd.f32 %v2185, %v2457
      %2459 = vmatmul.f32.gmra.mxu0 %v2248
      %v2460 = vpop.f32.mrf.mxu0
      %v2461 = vadd.f32 %v2185, %v2460
      %2462 = vmatmul.f32.gmra.mxu0 %v2251
      %v2463 = vpop.f32.mrf.mxu0
      %v2464 = vadd.f32 %v2185, %v2463
      %2465 = vmatmul.f32.gmra.mxu0 %v2254
      %v2466 = vpop.f32.mrf.mxu0
      %v2467 = vadd.f32 %v2185, %v2466
      %2468 = vmatmul.f32.gmra.mxu0 %v2257
      %v2469 = vpop.f32.mrf.mxu0
      %v2470 = vadd.f32 %v2185, %v2469
      %2471 = vmatmul.f32.gmra.mxu0 %v2260
      %v2472 = vpop.f32.mrf.mxu0
      %v2473 = vadd.f32 %v2185, %v2472
      %2474 = vmatmul.f32.gmra.mxu0 %v2263
      %v2475 = vpop.f32.mrf.mxu0
      %v2476 = vadd.f32 %v2185, %v2475
      %2477 = vmatmul.f32.gmra.mxu0 %v2266
      %v2478 = vpop.f32.mrf.mxu0
      %v2479 = vadd.f32 %v2185, %v2478
      %2480 = vmatmul.f32.gmra.mxu0 %v2269
      %v2481 = vpop.f32.mrf.mxu0
      %v2482 = vadd.f32 %v2185, %v2481
      %2483 = vmatmul.f32.gmra.mxu0 %v2272
      %v2484 = vpop.f32.mrf.mxu0
      %v2485 = vadd.f32 %v2185, %v2484
      %2486 = vmatmul.f32.gmra.mxu0 %v2275
      %v2487 = vpop.f32.mrf.mxu0
      %v2488 = vadd.f32 %v2185, %v2487
      %2489 = vmatmul.f32.gmra.mxu0 %v2278
      %v2490 = vpop.f32.mrf.mxu0
      %v2491 = vadd.f32 %v2185, %v2490
      %2492 = vmatmul.f32.gmra.mxu0 %v2281
      %v2493 = vpop.f32.mrf.mxu0
      %v2494 = vadd.f32 %v2185, %v2493
      %2495 = vmatmul.f32.gmra.mxu0 %v2284
      %v2496 = vpop.f32.mrf.mxu0
      %v2497 = vadd.f32 %v2185, %v2496
      %2498 = vmatmul.f32.gmra.mxu0 %v2287
      %v2499 = vpop.f32.mrf.mxu0
      %v2500 = vadd.f32 %v2185, %v2499
      %2501 = vmatmul.f32.gmra.mxu0 %v2290
      %v2502 = vpop.f32.mrf.mxu0
      %v2503 = vadd.f32 %v2185, %v2502
      %2504 = vmatmul.f32.gmra.mxu0 %v2293
      %v2505 = vpop.f32.mrf.mxu0
      %v2506 = vadd.f32 %v2185, %v2505
      %2507 = vmatmul.f32.gmra.mxu0 %v2296
      %v2508 = vpop.f32.mrf.mxu0
      %v2509 = vadd.f32 %v2185, %v2508
      %2510 = vmatmul.f32.gmra.mxu0 %v2299
      %v2511 = vpop.f32.mrf.mxu0
      %v2512 = vadd.f32 %v2185, %v2511
      %2513 = vmatmul.f32.gmra.mxu0 %v2302
      %v2514 = vpop.f32.mrf.mxu0
      %v2515 = vadd.f32 %v2185, %v2514
      %2516 = vmatmul.f32.gmra.mxu0 %v2305
      %v2517 = vpop.f32.mrf.mxu0
      %v2518 = vadd.f32 %v2185, %v2517
      %2519 = vmatmul.f32.gmra.mxu0 %v2308
      %v2520 = vpop.f32.mrf.mxu0
      %v2521 = vadd.f32 %v2185, %v2520
      %2522 = vmatmul.f32.gmra.mxu0 %v2311
      %v2523 = vpop.f32.mrf.mxu0
      %v2524 = vadd.f32 %v2185, %v2523
      %2525 = vmatmul.f32.gmra.mxu0 %v2314
      %v2526 = vpop.f32.mrf.mxu0
      %v2527 = vadd.f32 %v2185, %v2526
      %2528 = vmatmul.f32.gmra.mxu0 %v2317
      %v2529 = vpop.f32.mrf.mxu0
      %v2530 = vadd.f32 %v2185, %v2529
      %2531 = vmatmul.f32.gmra.mxu0 %v2320
      %v2532 = vpop.f32.mrf.mxu0
      %v2533 = vadd.f32 %v2185, %v2532
      %2534 = vmatmul.f32.gmra.mxu0 %v2323
      %v2535 = vpop.f32.mrf.mxu0
      %v2536 = vadd.f32 %v2185, %v2535
      %2537 = vmatmul.f32.gmra.mxu0 %v2326
      %v2538 = vpop.f32.mrf.mxu0
      %v2539 = vadd.f32 %v2185, %v2538
      %2540 = vmatmul.f32.gmra.mxu0 %v2329
      %v2541 = vpop.f32.mrf.mxu0
      %v2542 = vadd.f32 %v2185, %v2541
      %2543 = vmatmul.f32.gmra.mxu0 %v2332
      %v2544 = vpop.f32.mrf.mxu0
      %v2545 = vadd.f32 %v2185, %v2544
      %2546 = vmatmul.f32.gmra.mxu0 %v2335
      %v2547 = vpop.f32.mrf.mxu0
      %v2548 = vadd.f32 %v2185, %v2547
      %2549 = vmatmul.f32.gmra.mxu0 %v2338
      %v2550 = vpop.f32.mrf.mxu0
      %v2551 = vadd.f32 %v2185, %v2550
      %2552 = vmatmul.f32.gmra.mxu0 %v2341
      %v2553 = vpop.f32.mrf.mxu0
      %v2554 = vadd.f32 %v2185, %v2553
      %2555 = vmatmul.f32.gmra.mxu0 %v2344
      %v2556 = vpop.f32.mrf.mxu0
      %v2557 = vadd.f32 %v2185, %v2556
      %2558 = vmatmul.f32.gmra.mxu0 %v2347
      %v2559 = vpop.f32.mrf.mxu0
      %v2560 = vadd.f32 %v2185, %v2559
      %2561 = vmatmul.f32.gmra.mxu0 %v2350
      %v2562 = vpop.f32.mrf.mxu0
      %v2563 = vadd.f32 %v2185, %v2562
      %2564 = vmatmul.f32.gmra.mxu0 %v2353
      %v2565 = vpop.f32.mrf.mxu0
      %v2566 = vadd.f32 %v2185, %v2565
      %2567 = vmatmul.f32.gmra.mxu0 %v2356
      %v2568 = vpop.f32.mrf.mxu0
      %v2569 = vadd.f32 %v2185, %v2568
      %2570 = vmatmul.f32.gmra.mxu0 %v2359
      %v2571 = vpop.f32.mrf.mxu0
      %v2572 = vadd.f32 %v2185, %v2571
      %2573 = vmatmul.f32.gmra.mxu0 %v2362
      %v2574 = vpop.f32.mrf.mxu0
      %v2575 = vadd.f32 %v2185, %v2574
      %2576 = vmatmul.f32.gmra.mxu0 %v2365
      %v2577 = vpop.f32.mrf.mxu0
      %v2578 = vadd.f32 %v2185, %v2577
      %2579 = vmatmul.f32.gmra.mxu0 %v2368
      %v2580 = vpop.f32.mrf.mxu0
      %v2581 = vadd.f32 %v2185, %v2580
      %2582 = vmatmul.f32.gmra.mxu0 %v2371
      %v2583 = vpop.f32.mrf.mxu0
      %v2584 = vadd.f32 %v2185, %v2583
      %2585 = vmatmul.f32.gmra.mxu0 %v2374
      %v2586 = vpop.f32.mrf.mxu0
      %v2587 = vadd.f32 %v2185, %v2586
      %2588 = vmatmul.f32.gmra.mxu0 %v2377
      %v2589 = vpop.f32.mrf.mxu0
      %v2590 = vadd.f32 %v2185, %v2589
      %2591 = vdwg.mxu0
      %v2592 = vmax.f32 %v2401, 0.0
      %v2593 = vmax.f32 %v2404, 0.0
      %v2594 = vmax.f32 %v2407, 0.0
      %v2595 = vmax.f32 %v2410, 0.0
      %v2596 = vmax.f32 %v2413, 0.0
      %v2597 = vmax.f32 %v2416, 0.0
      %v2598 = vmax.f32 %v2419, 0.0
      %v2599 = vmax.f32 %v2422, 0.0
      %v2600 = vmax.f32 %v2425, 0.0
      %v2601 = vmax.f32 %v2428, 0.0
      %v2602 = vmax.f32 %v2431, 0.0
      %v2603 = vmax.f32 %v2434, 0.0
      %v2604 = vmax.f32 %v2437, 0.0
      %v2605 = vmax.f32 %v2440, 0.0
      %v2606 = vmax.f32 %v2443, 0.0
      %v2607 = vmax.f32 %v2446, 0.0
      %v2608 = vmax.f32 %v2449, 0.0
      %v2609 = vmax.f32 %v2452, 0.0
      %v2610 = vmax.f32 %v2455, 0.0
      %v2611 = vmax.f32 %v2458, 0.0
      %v2612 = vmax.f32 %v2461, 0.0
      %v2613 = vmax.f32 %v2464, 0.0
      %v2614 = vmax.f32 %v2467, 0.0
      %v2615 = vmax.f32 %v2470, 0.0
      %v2616 = vmax.f32 %v2473, 0.0
      %v2617 = vmax.f32 %v2476, 0.0
      %v2618 = vmax.f32 %v2479, 0.0
      %v2619 = vmax.f32 %v2482, 0.0
      %v2620 = vmax.f32 %v2485, 0.0
      %v2621 = vmax.f32 %v2488, 0.0
      %v2622 = vmax.f32 %v2491, 0.0
      %v2623 = vmax.f32 %v2494, 0.0
      %v2624 = vmax.f32 %v2497, 0.0
      %v2625 = vmax.f32 %v2500, 0.0
      %v2626 = vmax.f32 %v2503, 0.0
      %v2627 = vmax.f32 %v2506, 0.0
      %v2628 = vmax.f32 %v2509, 0.0
      %v2629 = vmax.f32 %v2512, 0.0
      %v2630 = vmax.f32 %v2515, 0.0
      %v2631 = vmax.f32 %v2518, 0.0
      %v2632 = vmax.f32 %v2521, 0.0
      %v2633 = vmax.f32 %v2524, 0.0
      %v2634 = vmax.f32 %v2527, 0.0
      %v2635 = vmax.f32 %v2530, 0.0
      %v2636 = vmax.f32 %v2533, 0.0
      %v2637 = vmax.f32 %v2536, 0.0
      %v2638 = vmax.f32 %v2539, 0.0
      %v2639 = vmax.f32 %v2542, 0.0
      %v2640 = vmax.f32 %v2545, 0.0
      %v2641 = vmax.f32 %v2548, 0.0
      %v2642 = vmax.f32 %v2551, 0.0
      %v2643 = vmax.f32 %v2554, 0.0
      %v2644 = vmax.f32 %v2557, 0.0
      %v2645 = vmax.f32 %v2560, 0.0
      %v2646 = vmax.f32 %v2563, 0.0
      %v2647 = vmax.f32 %v2566, 0.0
      %v2648 = vmax.f32 %v2569, 0.0
      %v2649 = vmax.f32 %v2572, 0.0
      %v2650 = vmax.f32 %v2575, 0.0
      %v2651 = vmax.f32 %v2578, 0.0
      %v2652 = vmax.f32 %v2581, 0.0
      %v2653 = vmax.f32 %v2584, 0.0
      %v2654 = vmax.f32 %v2587, 0.0
      %v2655 = vmax.f32 %v2590, 0.0
      %v2656 = vperm.slane %v317, 5
      %v2658 = vsel %vm1719, %v2592, 0
      %v2661 = vsel %vm1719, %v2593, 0
      %v2664 = vsel %vm1719, %v2594, 0
      %v2667 = vsel %vm1719, %v2595, 0
      %v2670 = vsel %vm1719, %v2596, 0
      %v2673 = vsel %vm1719, %v2597, 0
      %v2676 = vsel %vm1719, %v2598, 0
      %v2679 = vsel %vm1719, %v2599, 0
      %v2682 = vsel %vm1719, %v2600, 0
      %v2685 = vsel %vm1719, %v2601, 0
      %v2688 = vsel %vm1719, %v2602, 0
      %v2691 = vsel %vm1719, %v2603, 0
      %v2694 = vsel %vm1719, %v2604, 0
      %v2697 = vsel %vm1719, %v2605, 0
      %v2700 = vsel %vm1719, %v2606, 0
      %v2703 = vsel %vm1719, %v2607, 0
      %v2706 = vsel %vm1719, %v2608, 0
      %v2709 = vsel %vm1719, %v2609, 0
      %v2712 = vsel %vm1719, %v2610, 0
      %v2715 = vsel %vm1719, %v2611, 0
      %v2718 = vsel %vm1719, %v2612, 0
      %v2721 = vsel %vm1719, %v2613, 0
      %v2724 = vsel %vm1719, %v2614, 0
      %v2727 = vsel %vm1719, %v2615, 0
      %v2730 = vsel %vm1719, %v2616, 0
      %v2733 = vsel %vm1719, %v2617, 0
      %v2736 = vsel %vm1719, %v2618, 0
      %v2739 = vsel %vm1719, %v2619, 0
      %v2742 = vsel %vm1719, %v2620, 0
      %v2745 = vsel %vm1719, %v2621, 0
      %v2748 = vsel %vm1719, %v2622, 0
      %v2751 = vsel %vm1719, %v2623, 0
      %v2754 = vsel %vm1719, %v2624, 0
      %v2757 = vsel %vm1719, %v2625, 0
      %v2760 = vsel %vm1719, %v2626, 0
      %v2763 = vsel %vm1719, %v2627, 0
      %v2766 = vsel %vm1719, %v2628, 0
      %v2769 = vsel %vm1719, %v2629, 0
      %v2772 = vsel %vm1719, %v2630, 0
      %v2775 = vsel %vm1719, %v2631, 0
      %v2778 = vsel %vm1719, %v2632, 0
      %v2781 = vsel %vm1719, %v2633, 0
      %v2784 = vsel %vm1719, %v2634, 0
      %v2787 = vsel %vm1719, %v2635, 0
      %v2790 = vsel %vm1719, %v2636, 0
      %v2793 = vsel %vm1719, %v2637, 0
      %v2796 = vsel %vm1719, %v2638, 0
      %v2799 = vsel %vm1719, %v2639, 0
      %v2802 = vsel %vm1719, %v2640, 0
      %v2805 = vsel %vm1719, %v2641, 0
      %v2808 = vsel %vm1719, %v2642, 0
      %v2811 = vsel %vm1719, %v2643, 0
      %v2814 = vsel %vm1719, %v2644, 0
      %v2817 = vsel %vm1719, %v2645, 0
      %v2820 = vsel %vm1719, %v2646, 0
      %v2823 = vsel %vm1719, %v2647, 0
      %v2826 = vsel %vm1719, %v2648, 0
      %v2829 = vsel %vm1719, %v2649, 0
      %v2832 = vsel %vm1719, %v2650, 0
      %v2835 = vsel %vm1719, %v2651, 0
      %v2838 = vsel %vm1719, %v2652, 0
      %v2841 = vsel %vm1719, %v2653, 0
      %v2844 = vsel %vm1719, %v2654, 0
      %v2847 = vsel %vm1719, %v2655, 0
      %2849 = vmatpush.msra.mxu0 0.0
      %2850 = vmatpush.msra.mxu0 0.0
      %2851 = vmatpush.msra.mxu0 0.0
      %2852 = vmatpush.msra.mxu0 0.0
      %2853 = vmatpush.msra.mxu0 0.0
      %2854 = vmatpush.msra.mxu0 0.0
      %2855 = vmatpush.msra.mxu0 0.0
      %2856 = vmatpush.msra.mxu0 0.0
      %2857 = vmatpush.msra.mxu0 0.0
      %2858 = vmatpush.msra.mxu0 0.0
      %2859 = vmatpush.msra.mxu0 0.0
      %2860 = vmatpush.msra.mxu0 0.0
      %2861 = vmatpush.msra.mxu0 0.0
      %2862 = vmatpush.msra.mxu0 0.0
      %2863 = vmatpush.msra.mxu0 0.0
      %2864 = vmatpush.msra.mxu0 %v314
      %2865 = vmatmul.f32.gmra.mxu0 %v2658
      %v2866 = vpop.f32.mrf.mxu0
      %v2867 = vadd.f32 %v2656, %v2866
      %2868 = vmatmul.f32.gmra.mxu0 %v2661
      %v2869 = vpop.f32.mrf.mxu0
      %v2870 = vadd.f32 %v2656, %v2869
      %2871 = vmatmul.f32.gmra.mxu0 %v2664
      %v2872 = vpop.f32.mrf.mxu0
      %v2873 = vadd.f32 %v2656, %v2872
      %2874 = vmatmul.f32.gmra.mxu0 %v2667
      %v2875 = vpop.f32.mrf.mxu0
      %v2876 = vadd.f32 %v2656, %v2875
      %2877 = vmatmul.f32.gmra.mxu0 %v2670
      %v2878 = vpop.f32.mrf.mxu0
      %v2879 = vadd.f32 %v2656, %v2878
      %2880 = vmatmul.f32.gmra.mxu0 %v2673
      %v2881 = vpop.f32.mrf.mxu0
      %v2882 = vadd.f32 %v2656, %v2881
      %2883 = vmatmul.f32.gmra.mxu0 %v2676
      %v2884 = vpop.f32.mrf.mxu0
      %v2885 = vadd.f32 %v2656, %v2884
      %2886 = vmatmul.f32.gmra.mxu0 %v2679
      %v2887 = vpop.f32.mrf.mxu0
      %v2888 = vadd.f32 %v2656, %v2887
      %2889 = vmatmul.f32.gmra.mxu0 %v2682
      %v2890 = vpop.f32.mrf.mxu0
      %v2891 = vadd.f32 %v2656, %v2890
      %2892 = vmatmul.f32.gmra.mxu0 %v2685
      %v2893 = vpop.f32.mrf.mxu0
      %v2894 = vadd.f32 %v2656, %v2893
      %2895 = vmatmul.f32.gmra.mxu0 %v2688
      %v2896 = vpop.f32.mrf.mxu0
      %v2897 = vadd.f32 %v2656, %v2896
      %2898 = vmatmul.f32.gmra.mxu0 %v2691
      %v2899 = vpop.f32.mrf.mxu0
      %v2900 = vadd.f32 %v2656, %v2899
      %2901 = vmatmul.f32.gmra.mxu0 %v2694
      %v2902 = vpop.f32.mrf.mxu0
      %v2903 = vadd.f32 %v2656, %v2902
      %2904 = vmatmul.f32.gmra.mxu0 %v2697
      %v2905 = vpop.f32.mrf.mxu0
      %v2906 = vadd.f32 %v2656, %v2905
      %2907 = vmatmul.f32.gmra.mxu0 %v2700
      %v2908 = vpop.f32.mrf.mxu0
      %v2909 = vadd.f32 %v2656, %v2908
      %2910 = vmatmul.f32.gmra.mxu0 %v2703
      %v2911 = vpop.f32.mrf.mxu0
      %v2912 = vadd.f32 %v2656, %v2911
      %2913 = vmatmul.f32.gmra.mxu0 %v2706
      %v2914 = vpop.f32.mrf.mxu0
      %v2915 = vadd.f32 %v2656, %v2914
      %2916 = vmatmul.f32.gmra.mxu0 %v2709
      %v2917 = vpop.f32.mrf.mxu0
      %v2918 = vadd.f32 %v2656, %v2917
      %2919 = vmatmul.f32.gmra.mxu0 %v2712
      %v2920 = vpop.f32.mrf.mxu0
      %v2921 = vadd.f32 %v2656, %v2920
      %2922 = vmatmul.f32.gmra.mxu0 %v2715
      %v2923 = vpop.f32.mrf.mxu0
      %v2924 = vadd.f32 %v2656, %v2923
      %2925 = vmatmul.f32.gmra.mxu0 %v2718
      %v2926 = vpop.f32.mrf.mxu0
      %v2927 = vadd.f32 %v2656, %v2926
      %2928 = vmatmul.f32.gmra.mxu0 %v2721
      %v2929 = vpop.f32.mrf.mxu0
      %v2930 = vadd.f32 %v2656, %v2929
      %2931 = vmatmul.f32.gmra.mxu0 %v2724
      %v2932 = vpop.f32.mrf.mxu0
      %v2933 = vadd.f32 %v2656, %v2932
      %2934 = vmatmul.f32.gmra.mxu0 %v2727
      %v2935 = vpop.f32.mrf.mxu0
      %v2936 = vadd.f32 %v2656, %v2935
      %2937 = vmatmul.f32.gmra.mxu0 %v2730
      %v2938 = vpop.f32.mrf.mxu0
      %v2939 = vadd.f32 %v2656, %v2938
      %2940 = vmatmul.f32.gmra.mxu0 %v2733
      %v2941 = vpop.f32.mrf.mxu0
      %v2942 = vadd.f32 %v2656, %v2941
      %2943 = vmatmul.f32.gmra.mxu0 %v2736
      %v2944 = vpop.f32.mrf.mxu0
      %v2945 = vadd.f32 %v2656, %v2944
      %2946 = vmatmul.f32.gmra.mxu0 %v2739
      %v2947 = vpop.f32.mrf.mxu0
      %v2948 = vadd.f32 %v2656, %v2947
      %2949 = vmatmul.f32.gmra.mxu0 %v2742
      %v2950 = vpop.f32.mrf.mxu0
      %v2951 = vadd.f32 %v2656, %v2950
      %2952 = vmatmul.f32.gmra.mxu0 %v2745
      %v2953 = vpop.f32.mrf.mxu0
      %v2954 = vadd.f32 %v2656, %v2953
      %2955 = vmatmul.f32.gmra.mxu0 %v2748
      %v2956 = vpop.f32.mrf.mxu0
      %v2957 = vadd.f32 %v2656, %v2956
      %2958 = vmatmul.f32.gmra.mxu0 %v2751
      %v2959 = vpop.f32.mrf.mxu0
      %v2960 = vadd.f32 %v2656, %v2959
      %2961 = vmatmul.f32.gmra.mxu0 %v2754
      %v2962 = vpop.f32.mrf.mxu0
      %v2963 = vadd.f32 %v2656, %v2962
      %2964 = vmatmul.f32.gmra.mxu0 %v2757
      %v2965 = vpop.f32.mrf.mxu0
      %v2966 = vadd.f32 %v2656, %v2965
      %2967 = vmatmul.f32.gmra.mxu0 %v2760
      %v2968 = vpop.f32.mrf.mxu0
      %v2969 = vadd.f32 %v2656, %v2968
      %2970 = vmatmul.f32.gmra.mxu0 %v2763
      %v2971 = vpop.f32.mrf.mxu0
      %v2972 = vadd.f32 %v2656, %v2971
      %2973 = vmatmul.f32.gmra.mxu0 %v2766
      %v2974 = vpop.f32.mrf.mxu0
      %v2975 = vadd.f32 %v2656, %v2974
      %2976 = vmatmul.f32.gmra.mxu0 %v2769
      %v2977 = vpop.f32.mrf.mxu0
      %v2978 = vadd.f32 %v2656, %v2977
      %2979 = vmatmul.f32.gmra.mxu0 %v2772
      %v2980 = vpop.f32.mrf.mxu0
      %v2981 = vadd.f32 %v2656, %v2980
      %2982 = vmatmul.f32.gmra.mxu0 %v2775
      %v2983 = vpop.f32.mrf.mxu0
      %v2984 = vadd.f32 %v2656, %v2983
      %2985 = vmatmul.f32.gmra.mxu0 %v2778
      %v2986 = vpop.f32.mrf.mxu0
      %v2987 = vadd.f32 %v2656, %v2986
      %2988 = vmatmul.f32.gmra.mxu0 %v2781
      %v2989 = vpop.f32.mrf.mxu0
      %v2990 = vadd.f32 %v2656, %v2989
      %2991 = vmatmul.f32.gmra.mxu0 %v2784
      %v2992 = vpop.f32.mrf.mxu0
      %v2993 = vadd.f32 %v2656, %v2992
      %2994 = vmatmul.f32.gmra.mxu0 %v2787
      %v2995 = vpop.f32.mrf.mxu0
      %v2996 = vadd.f32 %v2656, %v2995
      %2997 = vmatmul.f32.gmra.mxu0 %v2790
      %v2998 = vpop.f32.mrf.mxu0
      %v2999 = vadd.f32 %v2656, %v2998
      %3000 = vmatmul.f32.gmra.mxu0 %v2793
      %v3001 = vpop.f32.mrf.mxu0
      %v3002 = vadd.f32 %v2656, %v3001
      %3003 = vmatmul.f32.gmra.mxu0 %v2796
      %v3004 = vpop.f32.mrf.mxu0
      %v3005 = vadd.f32 %v2656, %v3004
      %3006 = vmatmul.f32.gmra.mxu0 %v2799
      %v3007 = vpop.f32.mrf.mxu0
      %v3008 = vadd.f32 %v2656, %v3007
      %3009 = vmatmul.f32.gmra.mxu0 %v2802
      %v3010 = vpop.f32.mrf.mxu0
      %v3011 = vadd.f32 %v2656, %v3010
      %3012 = vmatmul.f32.gmra.mxu0 %v2805
      %v3013 = vpop.f32.mrf.mxu0
      %v3014 = vadd.f32 %v2656, %v3013
      %3015 = vmatmul.f32.gmra.mxu0 %v2808
      %v3016 = vpop.f32.mrf.mxu0
      %v3017 = vadd.f32 %v2656, %v3016
      %3018 = vmatmul.f32.gmra.mxu0 %v2811
      %v3019 = vpop.f32.mrf.mxu0
      %v3020 = vadd.f32 %v2656, %v3019
      %3021 = vmatmul.f32.gmra.mxu0 %v2814
      %v3022 = vpop.f32.mrf.mxu0
      %v3023 = vadd.f32 %v2656, %v3022
      %3024 = vmatmul.f32.gmra.mxu0 %v2817
      %v3025 = vpop.f32.mrf.mxu0
      %v3026 = vadd.f32 %v2656, %v3025
      %3027 = vmatmul.f32.gmra.mxu0 %v2820
      %v3028 = vpop.f32.mrf.mxu0
      %v3029 = vadd.f32 %v2656, %v3028
      %3030 = vmatmul.f32.gmra.mxu0 %v2823
      %v3031 = vpop.f32.mrf.mxu0
      %v3032 = vadd.f32 %v2656, %v3031
      %3033 = vmatmul.f32.gmra.mxu0 %v2826
      %v3034 = vpop.f32.mrf.mxu0
      %v3035 = vadd.f32 %v2656, %v3034
      %3036 = vmatmul.f32.gmra.mxu0 %v2829
      %v3037 = vpop.f32.mrf.mxu0
      %v3038 = vadd.f32 %v2656, %v3037
      %3039 = vmatmul.f32.gmra.mxu0 %v2832
      %v3040 = vpop.f32.mrf.mxu0
      %v3041 = vadd.f32 %v2656, %v3040
      %3042 = vmatmul.f32.gmra.mxu0 %v2835
      %v3043 = vpop.f32.mrf.mxu0
      %v3044 = vadd.f32 %v2656, %v3043
      %3045 = vmatmul.f32.gmra.mxu0 %v2838
      %v3046 = vpop.f32.mrf.mxu0
      %v3047 = vadd.f32 %v2656, %v3046
      %3048 = vmatmul.f32.gmra.mxu0 %v2841
      %v3049 = vpop.f32.mrf.mxu0
      %v3050 = vadd.f32 %v2656, %v3049
      %3051 = vmatmul.f32.gmra.mxu0 %v2844
      %v3052 = vpop.f32.mrf.mxu0
      %v3053 = vadd.f32 %v2656, %v3052
      %3054 = vmatmul.f32.gmra.mxu0 %v2847
      %v3055 = vpop.f32.mrf.mxu0
      %v3056 = vadd.f32 %v2656, %v3055
      %3057 = vdwg.mxu0
      %v3058 = vmax.f32 %v2867, 0.0
      %v3059 = vmax.f32 %v2870, 0.0
      %v3060 = vmax.f32 %v2873, 0.0
      %v3061 = vmax.f32 %v2876, 0.0
      %v3062 = vmax.f32 %v2879, 0.0
      %v3063 = vmax.f32 %v2882, 0.0
      %v3064 = vmax.f32 %v2885, 0.0
      %v3065 = vmax.f32 %v2888, 0.0
      %v3066 = vmax.f32 %v2891, 0.0
      %v3067 = vmax.f32 %v2894, 0.0
      %v3068 = vmax.f32 %v2897, 0.0
      %v3069 = vmax.f32 %v2900, 0.0
      %v3070 = vmax.f32 %v2903, 0.0
      %v3071 = vmax.f32 %v2906, 0.0
      %v3072 = vmax.f32 %v2909, 0.0
      %v3073 = vmax.f32 %v2912, 0.0
      %v3074 = vmax.f32 %v2915, 0.0
      %v3075 = vmax.f32 %v2918, 0.0
      %v3076 = vmax.f32 %v2921, 0.0
      %v3077 = vmax.f32 %v2924, 0.0
      %v3078 = vmax.f32 %v2927, 0.0
      %v3079 = vmax.f32 %v2930, 0.0
      %v3080 = vmax.f32 %v2933, 0.0
      %v3081 = vmax.f32 %v2936, 0.0
      %v3082 = vmax.f32 %v2939, 0.0
      %v3083 = vmax.f32 %v2942, 0.0
      %v3084 = vmax.f32 %v2945, 0.0
      %v3085 = vmax.f32 %v2948, 0.0
      %v3086 = vmax.f32 %v2951, 0.0
      %v3087 = vmax.f32 %v2954, 0.0
      %v3088 = vmax.f32 %v2957, 0.0
      %v3089 = vmax.f32 %v2960, 0.0
      %v3090 = vmax.f32 %v2963, 0.0
      %v3091 = vmax.f32 %v2966, 0.0
      %v3092 = vmax.f32 %v2969, 0.0
      %v3093 = vmax.f32 %v2972, 0.0
      %v3094 = vmax.f32 %v2975, 0.0
      %v3095 = vmax.f32 %v2978, 0.0
      %v3096 = vmax.f32 %v2981, 0.0
      %v3097 = vmax.f32 %v2984, 0.0
      %v3098 = vmax.f32 %v2987, 0.0
      %v3099 = vmax.f32 %v2990, 0.0
      %v3100 = vmax.f32 %v2993, 0.0
      %v3101 = vmax.f32 %v2996, 0.0
      %v3102 = vmax.f32 %v2999, 0.0
      %v3103 = vmax.f32 %v3002, 0.0
      %v3104 = vmax.f32 %v3005, 0.0
      %v3105 = vmax.f32 %v3008, 0.0
      %v3106 = vmax.f32 %v3011, 0.0
      %v3107 = vmax.f32 %v3014, 0.0
      %v3108 = vmax.f32 %v3017, 0.0
      %v3109 = vmax.f32 %v3020, 0.0
      %v3110 = vmax.f32 %v3023, 0.0
      %v3111 = vmax.f32 %v3026, 0.0
      %v3112 = vmax.f32 %v3029, 0.0
      %v3113 = vmax.f32 %v3032, 0.0
      %v3114 = vmax.f32 %v3035, 0.0
      %v3115 = vmax.f32 %v3038, 0.0
      %v3116 = vmax.f32 %v3041, 0.0
      %v3117 = vmax.f32 %v3044, 0.0
      %v3118 = vmax.f32 %v3047, 0.0
      %v3119 = vmax.f32 %v3050, 0.0
      %v3120 = vmax.f32 %v3053, 0.0
      %v3121 = vmax.f32 %v3056, 0.0
      %v3122 = vperm.slane %v317, 6
      %v3124 = vsel %vm1252, %v3058, 0
      %v3127 = vsel %vm1252, %v3059, 0
      %v3130 = vsel %vm1252, %v3060, 0
      %v3133 = vsel %vm1252, %v3061, 0
      %v3136 = vsel %vm1252, %v3062, 0
      %v3139 = vsel %vm1252, %v3063, 0
      %v3142 = vsel %vm1252, %v3064, 0
      %v3145 = vsel %vm1252, %v3065, 0
      %v3148 = vsel %vm1252, %v3066, 0
      %v3151 = vsel %vm1252, %v3067, 0
      %v3154 = vsel %vm1252, %v3068, 0
      %v3157 = vsel %vm1252, %v3069, 0
      %v3160 = vsel %vm1252, %v3070, 0
      %v3163 = vsel %vm1252, %v3071, 0
      %v3166 = vsel %vm1252, %v3072, 0
      %v3169 = vsel %vm1252, %v3073, 0
      %v3172 = vsel %vm1252, %v3074, 0
      %v3175 = vsel %vm1252, %v3075, 0
      %v3178 = vsel %vm1252, %v3076, 0
      %v3181 = vsel %vm1252, %v3077, 0
      %v3184 = vsel %vm1252, %v3078, 0
      %v3187 = vsel %vm1252, %v3079, 0
      %v3190 = vsel %vm1252, %v3080, 0
      %v3193 = vsel %vm1252, %v3081, 0
      %v3196 = vsel %vm1252, %v3082, 0
      %v3199 = vsel %vm1252, %v3083, 0
      %v3202 = vsel %vm1252, %v3084, 0
      %v3205 = vsel %vm1252, %v3085, 0
      %v3208 = vsel %vm1252, %v3086, 0
      %v3211 = vsel %vm1252, %v3087, 0
      %v3214 = vsel %vm1252, %v3088, 0
      %v3217 = vsel %vm1252, %v3089, 0
      %v3220 = vsel %vm1252, %v3090, 0
      %v3223 = vsel %vm1252, %v3091, 0
      %v3226 = vsel %vm1252, %v3092, 0
      %v3229 = vsel %vm1252, %v3093, 0
      %v3232 = vsel %vm1252, %v3094, 0
      %v3235 = vsel %vm1252, %v3095, 0
      %v3238 = vsel %vm1252, %v3096, 0
      %v3241 = vsel %vm1252, %v3097, 0
      %v3244 = vsel %vm1252, %v3098, 0
      %v3247 = vsel %vm1252, %v3099, 0
      %v3250 = vsel %vm1252, %v3100, 0
      %v3253 = vsel %vm1252, %v3101, 0
      %v3256 = vsel %vm1252, %v3102, 0
      %v3259 = vsel %vm1252, %v3103, 0
      %v3262 = vsel %vm1252, %v3104, 0
      %v3265 = vsel %vm1252, %v3105, 0
      %v3268 = vsel %vm1252, %v3106, 0
      %v3271 = vsel %vm1252, %v3107, 0
      %v3274 = vsel %vm1252, %v3108, 0
      %v3277 = vsel %vm1252, %v3109, 0
      %v3280 = vsel %vm1252, %v3110, 0
      %v3283 = vsel %vm1252, %v3111, 0
      %v3286 = vsel %vm1252, %v3112, 0
      %v3289 = vsel %vm1252, %v3113, 0
      %v3292 = vsel %vm1252, %v3114, 0
      %v3295 = vsel %vm1252, %v3115, 0
      %v3298 = vsel %vm1252, %v3116, 0
      %v3301 = vsel %vm1252, %v3117, 0
      %v3304 = vsel %vm1252, %v3118, 0
      %v3307 = vsel %vm1252, %v3119, 0
      %v3310 = vsel %vm1252, %v3120, 0
      %v3313 = vsel %vm1252, %v3121, 0
      %3315 = vmatpush.msra.mxu0 0.0
      %3316 = vmatpush.msra.mxu0 0.0
      %3317 = vmatpush.msra.mxu0 0.0
      %3318 = vmatpush.msra.mxu0 0.0
      %3319 = vmatpush.msra.mxu0 0.0
      %3320 = vmatpush.msra.mxu0 0.0
      %3321 = vmatpush.msra.mxu0 0.0
      %3322 = vmatpush.msra.mxu0 0.0
      %3323 = vmatpush.msra.mxu0 0.0
      %3324 = vmatpush.msra.mxu0 0.0
      %3325 = vmatpush.msra.mxu0 0.0
      %3326 = vmatpush.msra.mxu0 0.0
      %3327 = vmatpush.msra.mxu0 0.0
      %3328 = vmatpush.msra.mxu0 0.0
      %3329 = vmatpush.msra.mxu0 %v316
      %3330 = vmatpush.msra.mxu0 %v315
      %3331 = vmatmul.f32.gmra.mxu0 %v3124
      %v3332 = vpop.f32.mrf.mxu0
      %v3333 = vadd.f32 %v3122, %v3332
      %3334 = vmatmul.f32.gmra.mxu0 %v3127
      %v3335 = vpop.f32.mrf.mxu0
      %v3336 = vadd.f32 %v3122, %v3335
      %3337 = vmatmul.f32.gmra.mxu0 %v3130
      %v3338 = vpop.f32.mrf.mxu0
      %v3339 = vadd.f32 %v3122, %v3338
      %3340 = vmatmul.f32.gmra.mxu0 %v3133
      %v3341 = vpop.f32.mrf.mxu0
      %v3342 = vadd.f32 %v3122, %v3341
      %3343 = vmatmul.f32.gmra.mxu0 %v3136
      %v3344 = vpop.f32.mrf.mxu0
      %v3345 = vadd.f32 %v3122, %v3344
      %3346 = vmatmul.f32.gmra.mxu0 %v3139
      %v3347 = vpop.f32.mrf.mxu0
      %v3348 = vadd.f32 %v3122, %v3347
      %3349 = vmatmul.f32.gmra.mxu0 %v3142
      %v3350 = vpop.f32.mrf.mxu0
      %v3351 = vadd.f32 %v3122, %v3350
      %3352 = vmatmul.f32.gmra.mxu0 %v3145
      %v3353 = vpop.f32.mrf.mxu0
      %v3354 = vadd.f32 %v3122, %v3353
      %3355 = vmatmul.f32.gmra.mxu0 %v3148
      %v3356 = vpop.f32.mrf.mxu0
      %v3357 = vadd.f32 %v3122, %v3356
      %3358 = vmatmul.f32.gmra.mxu0 %v3151
      %v3359 = vpop.f32.mrf.mxu0
      %v3360 = vadd.f32 %v3122, %v3359
      %3361 = vmatmul.f32.gmra.mxu0 %v3154
      %v3362 = vpop.f32.mrf.mxu0
      %v3363 = vadd.f32 %v3122, %v3362
      %3364 = vmatmul.f32.gmra.mxu0 %v3157
      %v3365 = vpop.f32.mrf.mxu0
      %v3366 = vadd.f32 %v3122, %v3365
      %3367 = vmatmul.f32.gmra.mxu0 %v3160
      %v3368 = vpop.f32.mrf.mxu0
      %v3369 = vadd.f32 %v3122, %v3368
      %3370 = vmatmul.f32.gmra.mxu0 %v3163
      %v3371 = vpop.f32.mrf.mxu0
      %v3372 = vadd.f32 %v3122, %v3371
      %3373 = vmatmul.f32.gmra.mxu0 %v3166
      %v3374 = vpop.f32.mrf.mxu0
      %v3375 = vadd.f32 %v3122, %v3374
      %3376 = vmatmul.f32.gmra.mxu0 %v3169
      %v3377 = vpop.f32.mrf.mxu0
      %v3378 = vadd.f32 %v3122, %v3377
      %3379 = vmatmul.f32.gmra.mxu0 %v3172
      %v3380 = vpop.f32.mrf.mxu0
      %v3381 = vadd.f32 %v3122, %v3380
      %3382 = vmatmul.f32.gmra.mxu0 %v3175
      %v3383 = vpop.f32.mrf.mxu0
      %v3384 = vadd.f32 %v3122, %v3383
      %3385 = vmatmul.f32.gmra.mxu0 %v3178
      %v3386 = vpop.f32.mrf.mxu0
      %v3387 = vadd.f32 %v3122, %v3386
      %3388 = vmatmul.f32.gmra.mxu0 %v3181
      %v3389 = vpop.f32.mrf.mxu0
      %v3390 = vadd.f32 %v3122, %v3389
      %3391 = vmatmul.f32.gmra.mxu0 %v3184
      %v3392 = vpop.f32.mrf.mxu0
      %v3393 = vadd.f32 %v3122, %v3392
      %3394 = vmatmul.f32.gmra.mxu0 %v3187
      %v3395 = vpop.f32.mrf.mxu0
      %v3396 = vadd.f32 %v3122, %v3395
      %3397 = vmatmul.f32.gmra.mxu0 %v3190
      %v3398 = vpop.f32.mrf.mxu0
      %v3399 = vadd.f32 %v3122, %v3398
      %3400 = vmatmul.f32.gmra.mxu0 %v3193
      %v3401 = vpop.f32.mrf.mxu0
      %v3402 = vadd.f32 %v3122, %v3401
      %3403 = vmatmul.f32.gmra.mxu0 %v3196
      %v3404 = vpop.f32.mrf.mxu0
      %v3405 = vadd.f32 %v3122, %v3404
      %3406 = vmatmul.f32.gmra.mxu0 %v3199
      %v3407 = vpop.f32.mrf.mxu0
      %v3408 = vadd.f32 %v3122, %v3407
      %3409 = vmatmul.f32.gmra.mxu0 %v3202
      %v3410 = vpop.f32.mrf.mxu0
      %v3411 = vadd.f32 %v3122, %v3410
      %3412 = vmatmul.f32.gmra.mxu0 %v3205
      %v3413 = vpop.f32.mrf.mxu0
      %v3414 = vadd.f32 %v3122, %v3413
      %3415 = vmatmul.f32.gmra.mxu0 %v3208
      %v3416 = vpop.f32.mrf.mxu0
      %v3417 = vadd.f32 %v3122, %v3416
      %3418 = vmatmul.f32.gmra.mxu0 %v3211
      %v3419 = vpop.f32.mrf.mxu0
      %v3420 = vadd.f32 %v3122, %v3419
      %3421 = vmatmul.f32.gmra.mxu0 %v3214
      %v3422 = vpop.f32.mrf.mxu0
      %v3423 = vadd.f32 %v3122, %v3422
      %3424 = vmatmul.f32.gmra.mxu0 %v3217
      %v3425 = vpop.f32.mrf.mxu0
      %v3426 = vadd.f32 %v3122, %v3425
      %3427 = vmatmul.f32.gmra.mxu0 %v3220
      %v3428 = vpop.f32.mrf.mxu0
      %v3429 = vadd.f32 %v3122, %v3428
      %3430 = vmatmul.f32.gmra.mxu0 %v3223
      %v3431 = vpop.f32.mrf.mxu0
      %v3432 = vadd.f32 %v3122, %v3431
      %3433 = vmatmul.f32.gmra.mxu0 %v3226
      %v3434 = vpop.f32.mrf.mxu0
      %v3435 = vadd.f32 %v3122, %v3434
      %3436 = vmatmul.f32.gmra.mxu0 %v3229
      %v3437 = vpop.f32.mrf.mxu0
      %v3438 = vadd.f32 %v3122, %v3437
      %3439 = vmatmul.f32.gmra.mxu0 %v3232
      %v3440 = vpop.f32.mrf.mxu0
      %v3441 = vadd.f32 %v3122, %v3440
      %3442 = vmatmul.f32.gmra.mxu0 %v3235
      %v3443 = vpop.f32.mrf.mxu0
      %v3444 = vadd.f32 %v3122, %v3443
      %3445 = vmatmul.f32.gmra.mxu0 %v3238
      %v3446 = vpop.f32.mrf.mxu0
      %v3447 = vadd.f32 %v3122, %v3446
      %3448 = vmatmul.f32.gmra.mxu0 %v3241
      %v3449 = vpop.f32.mrf.mxu0
      %v3450 = vadd.f32 %v3122, %v3449
      %3451 = vmatmul.f32.gmra.mxu0 %v3244
      %v3452 = vpop.f32.mrf.mxu0
      %v3453 = vadd.f32 %v3122, %v3452
      %3454 = vmatmul.f32.gmra.mxu0 %v3247
      %v3455 = vpop.f32.mrf.mxu0
      %v3456 = vadd.f32 %v3122, %v3455
      %3457 = vmatmul.f32.gmra.mxu0 %v3250
      %v3458 = vpop.f32.mrf.mxu0
      %v3459 = vadd.f32 %v3122, %v3458
      %3460 = vmatmul.f32.gmra.mxu0 %v3253
      %v3461 = vpop.f32.mrf.mxu0
      %v3462 = vadd.f32 %v3122, %v3461
      %3463 = vmatmul.f32.gmra.mxu0 %v3256
      %v3464 = vpop.f32.mrf.mxu0
      %v3465 = vadd.f32 %v3122, %v3464
      %3466 = vmatmul.f32.gmra.mxu0 %v3259
      %v3467 = vpop.f32.mrf.mxu0
      %v3468 = vadd.f32 %v3122, %v3467
      %3469 = vmatmul.f32.gmra.mxu0 %v3262
      %v3470 = vpop.f32.mrf.mxu0
      %v3471 = vadd.f32 %v3122, %v3470
      %3472 = vmatmul.f32.gmra.mxu0 %v3265
      %v3473 = vpop.f32.mrf.mxu0
      %v3474 = vadd.f32 %v3122, %v3473
      %3475 = vmatmul.f32.gmra.mxu0 %v3268
      %v3476 = vpop.f32.mrf.mxu0
      %v3477 = vadd.f32 %v3122, %v3476
      %3478 = vmatmul.f32.gmra.mxu0 %v3271
      %v3479 = vpop.f32.mrf.mxu0
      %v3480 = vadd.f32 %v3122, %v3479
      %3481 = vmatmul.f32.gmra.mxu0 %v3274
      %v3482 = vpop.f32.mrf.mxu0
      %v3483 = vadd.f32 %v3122, %v3482
      %3484 = vmatmul.f32.gmra.mxu0 %v3277
      %v3485 = vpop.f32.mrf.mxu0
      %v3486 = vadd.f32 %v3122, %v3485
      %3487 = vmatmul.f32.gmra.mxu0 %v3280
      %v3488 = vpop.f32.mrf.mxu0
      %v3489 = vadd.f32 %v3122, %v3488
      %3490 = vmatmul.f32.gmra.mxu0 %v3283
      %v3491 = vpop.f32.mrf.mxu0
      %v3492 = vadd.f32 %v3122, %v3491
      %3493 = vmatmul.f32.gmra.mxu0 %v3286
      %v3494 = vpop.f32.mrf.mxu0
      %v3495 = vadd.f32 %v3122, %v3494
      %3496 = vmatmul.f32.gmra.mxu0 %v3289
      %v3497 = vpop.f32.mrf.mxu0
      %v3498 = vadd.f32 %v3122, %v3497
      %3499 = vmatmul.f32.gmra.mxu0 %v3292
      %v3500 = vpop.f32.mrf.mxu0
      %v3501 = vadd.f32 %v3122, %v3500
      %3502 = vmatmul.f32.gmra.mxu0 %v3295
      %v3503 = vpop.f32.mrf.mxu0
      %v3504 = vadd.f32 %v3122, %v3503
      %3505 = vmatmul.f32.gmra.mxu0 %v3298
      %v3506 = vpop.f32.mrf.mxu0
      %v3507 = vadd.f32 %v3122, %v3506
      %3508 = vmatmul.f32.gmra.mxu0 %v3301
      %v3509 = vpop.f32.mrf.mxu0
      %v3510 = vadd.f32 %v3122, %v3509
      %3511 = vmatmul.f32.gmra.mxu0 %v3304
      %v3512 = vpop.f32.mrf.mxu0
      %v3513 = vadd.f32 %v3122, %v3512
      %3514 = vmatmul.f32.gmra.mxu0 %v3307
      %v3515 = vpop.f32.mrf.mxu0
      %v3516 = vadd.f32 %v3122, %v3515
      %3517 = vmatmul.f32.gmra.mxu0 %v3310
      %v3518 = vpop.f32.mrf.mxu0
      %v3519 = vadd.f32 %v3122, %v3518
      %3520 = vmatmul.f32.gmra.mxu0 %v3313
      %v3521 = vpop.f32.mrf.mxu0
      %v3522 = vadd.f32 %v3122, %v3521
      %3523 = vdwg.mxu0
      %v3524 = vpack.c.bf16 %v3333, %v3333
      %v3525 = vpack.c.bf16 %v3336, %v3336
      %v3526 = vpack.c.bf16 %v3339, %v3339
      %v3527 = vpack.c.bf16 %v3342, %v3342
      %v3528 = vpack.c.bf16 %v3345, %v3345
      %v3529 = vpack.c.bf16 %v3348, %v3348
      %v3530 = vpack.c.bf16 %v3351, %v3351
      %v3531 = vpack.c.bf16 %v3354, %v3354
      %v3532 = vpack.c.bf16 %v3357, %v3357
      %v3533 = vpack.c.bf16 %v3360, %v3360
      %v3534 = vpack.c.bf16 %v3363, %v3363
      %v3535 = vpack.c.bf16 %v3366, %v3366
      %v3536 = vpack.c.bf16 %v3369, %v3369
      %v3537 = vpack.c.bf16 %v3372, %v3372
      %v3538 = vpack.c.bf16 %v3375, %v3375
      %v3539 = vpack.c.bf16 %v3378, %v3378
      %v3540 = vpack.c.bf16 %v3381, %v3381
      %v3541 = vpack.c.bf16 %v3384, %v3384
      %v3542 = vpack.c.bf16 %v3387, %v3387
      %v3543 = vpack.c.bf16 %v3390, %v3390
      %v3544 = vpack.c.bf16 %v3393, %v3393
      %v3545 = vpack.c.bf16 %v3396, %v3396
      %v3546 = vpack.c.bf16 %v3399, %v3399
      %v3547 = vpack.c.bf16 %v3402, %v3402
      %v3548 = vpack.c.bf16 %v3405, %v3405
      %v3549 = vpack.c.bf16 %v3408, %v3408
      %v3550 = vpack.c.bf16 %v3411, %v3411
      %v3551 = vpack.c.bf16 %v3414, %v3414
      %v3552 = vpack.c.bf16 %v3417, %v3417
      %v3553 = vpack.c.bf16 %v3420, %v3420
      %v3554 = vpack.c.bf16 %v3423, %v3423
      %v3555 = vpack.c.bf16 %v3426, %v3426
      %v3556 = vpack.c.bf16 %v3429, %v3429
      %v3557 = vpack.c.bf16 %v3432, %v3432
      %v3558 = vpack.c.bf16 %v3435, %v3435
      %v3559 = vpack.c.bf16 %v3438, %v3438
      %v3560 = vpack.c.bf16 %v3441, %v3441
      %v3561 = vpack.c.bf16 %v3444, %v3444
      %v3562 = vpack.c.bf16 %v3447, %v3447
      %v3563 = vpack.c.bf16 %v3450, %v3450
      %v3564 = vpack.c.bf16 %v3453, %v3453
      %v3565 = vpack.c.bf16 %v3456, %v3456
      %v3566 = vpack.c.bf16 %v3459, %v3459
      %v3567 = vpack.c.bf16 %v3462, %v3462
      %v3568 = vpack.c.bf16 %v3465, %v3465
      %v3569 = vpack.c.bf16 %v3468, %v3468
      %v3570 = vpack.c.bf16 %v3471, %v3471
      %v3571 = vpack.c.bf16 %v3474, %v3474
      %v3572 = vpack.c.bf16 %v3477, %v3477
      %v3573 = vpack.c.bf16 %v3480, %v3480
      %v3574 = vpack.c.bf16 %v3483, %v3483
      %v3575 = vpack.c.bf16 %v3486, %v3486
      %v3576 = vpack.c.bf16 %v3489, %v3489
      %v3577 = vpack.c.bf16 %v3492, %v3492
      %v3578 = vpack.c.bf16 %v3495, %v3495
      %v3579 = vpack.c.bf16 %v3498, %v3498
      %v3580 = vpack.c.bf16 %v3501, %v3501
      %v3581 = vpack.c.bf16 %v3504, %v3504
      %v3582 = vpack.c.bf16 %v3507, %v3507
      %v3583 = vpack.c.bf16 %v3510, %v3510
      %v3584 = vpack.c.bf16 %v3513, %v3513
      %v3585 = vpack.c.bf16 %v3516, %v3516
      %v3586 = vpack.c.bf16 %v3519, %v3519
      %v3587 = vpack.c.bf16 %v3522, %v3522
      %vm3588 = vcmask 257024
      %3589 = vst.msk [vmem:[%s172] sm:$0xf] %vm3588, %v3524
      %3590 = vst.msk [vmem:[%s172 + $0x4] sm:$0xf] %vm3588, %v3525
      %3591 = vst.msk [vmem:[%s172 + $0x8] sm:$0xf] %vm3588, %v3526
      %3592 = vst.msk [vmem:[%s172 + $0xc] sm:$0xf] %vm3588, %v3527
      %3593 = vst.msk [vmem:[%s172 + $0x10] sm:$0xf] %vm3588, %v3528
      %3594 = vst.msk [vmem:[%s172 + $0x14] sm:$0xf] %vm3588, %v3529
      %3595 = vst.msk [vmem:[%s172 + $0x18] sm:$0xf] %vm3588, %v3530
      %3596 = vst.msk [vmem:[%s172 + $0x1c] sm:$0xf] %vm3588, %v3531
      %3597 = vst.msk [vmem:[%s172 + $0x20] sm:$0xf] %vm3588, %v3532
      %3598 = vst.msk [vmem:[%s172 + $0x24] sm:$0xf] %vm3588, %v3533
      %3599 = vst.msk [vmem:[%s172 + $0x28] sm:$0xf] %vm3588, %v3534
      %3600 = vst.msk [vmem:[%s172 + $0x2c] sm:$0xf] %vm3588, %v3535
      %3601 = vst.msk [vmem:[%s172 + $0x30] sm:$0xf] %vm3588, %v3536
      %3602 = vst.msk [vmem:[%s172 + $0x34] sm:$0xf] %vm3588, %v3537
      %3603 = vst.msk [vmem:[%s172 + $0x38] sm:$0xf] %vm3588, %v3538
      %3604 = vst.msk [vmem:[%s172 + $0x3c] sm:$0xf] %vm3588, %v3539
      %3605 = vst.msk [vmem:[%s172 + $0x40] sm:$0xf] %vm3588, %v3540
      %3606 = vst.msk [vmem:[%s172 + $0x44] sm:$0xf] %vm3588, %v3541
      %3607 = vst.msk [vmem:[%s172 + $0x48] sm:$0xf] %vm3588, %v3542
      %3608 = vst.msk [vmem:[%s172 + $0x4c] sm:$0xf] %vm3588, %v3543
      %3609 = vst.msk [vmem:[%s172 + $0x50] sm:$0xf] %vm3588, %v3544
      %3610 = vst.msk [vmem:[%s172 + $0x54] sm:$0xf] %vm3588, %v3545
      %3611 = vst.msk [vmem:[%s172 + $0x58] sm:$0xf] %vm3588, %v3546
      %3612 = vst.msk [vmem:[%s172 + $0x5c] sm:$0xf] %vm3588, %v3547
      %3613 = vst.msk [vmem:[%s172 + $0x60] sm:$0xf] %vm3588, %v3548
      %3614 = vst.msk [vmem:[%s172 + $0x64] sm:$0xf] %vm3588, %v3549
      %3615 = vst.msk [vmem:[%s172 + $0x68] sm:$0xf] %vm3588, %v3550
      %3616 = vst.msk [vmem:[%s172 + $0x6c] sm:$0xf] %vm3588, %v3551
      %3617 = vst.msk [vmem:[%s172 + $0x70] sm:$0xf] %vm3588, %v3552
      %3618 = vst.msk [vmem:[%s172 + $0x74] sm:$0xf] %vm3588, %v3553
      %3619 = vst.msk [vmem:[%s172 + $0x78] sm:$0xf] %vm3588, %v3554
      %3620 = vst.msk [vmem:[%s172 + $0x7c] sm:$0xf] %vm3588, %v3555
      %3621 = vst.msk [vmem:[%s172 + $0x80] sm:$0xf] %vm3588, %v3556
      %3622 = vst.msk [vmem:[%s172 + $0x84] sm:$0xf] %vm3588, %v3557
      %3623 = vst.msk [vmem:[%s172 + $0x88] sm:$0xf] %vm3588, %v3558
      %3624 = vst.msk [vmem:[%s172 + $0x8c] sm:$0xf] %vm3588, %v3559
      %3625 = vst.msk [vmem:[%s172 + $0x90] sm:$0xf] %vm3588, %v3560
      %3626 = vst.msk [vmem:[%s172 + $0x94] sm:$0xf] %vm3588, %v3561
      %3627 = vst.msk [vmem:[%s172 + $0x98] sm:$0xf] %vm3588, %v3562
      %3628 = vst.msk [vmem:[%s172 + $0x9c] sm:$0xf] %vm3588, %v3563
      %3629 = vst.msk [vmem:[%s172 + $0xa0] sm:$0xf] %vm3588, %v3564
      %3630 = vst.msk [vmem:[%s172 + $0xa4] sm:$0xf] %vm3588, %v3565
      %3631 = vst.msk [vmem:[%s172 + $0xa8] sm:$0xf] %vm3588, %v3566
      %3632 = vst.msk [vmem:[%s172 + $0xac] sm:$0xf] %vm3588, %v3567
      %3633 = vst.msk [vmem:[%s172 + $0xb0] sm:$0xf] %vm3588, %v3568
      %3634 = vst.msk [vmem:[%s172 + $0xb4] sm:$0xf] %vm3588, %v3569
      %3635 = vst.msk [vmem:[%s172 + $0xb8] sm:$0xf] %vm3588, %v3570
      %3636 = vst.msk [vmem:[%s172 + $0xbc] sm:$0xf] %vm3588, %v3571
      %3637 = vst.msk [vmem:[%s172 + $0xc0] sm:$0xf] %vm3588, %v3572
      %3638 = vst.msk [vmem:[%s172 + $0xc4] sm:$0xf] %vm3588, %v3573
      %3639 = vst.msk [vmem:[%s172 + $0xc8] sm:$0xf] %vm3588, %v3574
      %3640 = vst.msk [vmem:[%s172 + $0xcc] sm:$0xf] %vm3588, %v3575
      %3641 = vst.msk [vmem:[%s172 + $0xd0] sm:$0xf] %vm3588, %v3576
      %3642 = vst.msk [vmem:[%s172 + $0xd4] sm:$0xf] %vm3588, %v3577
      %3643 = vst.msk [vmem:[%s172 + $0xd8] sm:$0xf] %vm3588, %v3578
      %3644 = vst.msk [vmem:[%s172 + $0xdc] sm:$0xf] %vm3588, %v3579
      %3645 = vst.msk [vmem:[%s172 + $0xe0] sm:$0xf] %vm3588, %v3580
      %3646 = vst.msk [vmem:[%s172 + $0xe4] sm:$0xf] %vm3588, %v3581
      %3647 = vst.msk [vmem:[%s172 + $0xe8] sm:$0xf] %vm3588, %v3582
      %3648 = vst.msk [vmem:[%s172 + $0xec] sm:$0xf] %vm3588, %v3583
      %3649 = vst.msk [vmem:[%s172 + $0xf0] sm:$0xf] %vm3588, %v3584
      %3650 = vst.msk [vmem:[%s172 + $0xf4] sm:$0xf] %vm3588, %v3585
      %3651 = vst.msk [vmem:[%s172 + $0xf8] sm:$0xf] %vm3588, %v3586
      %3652 = vst.msk [vmem:[%s172 + $0xfc] sm:$0xf] %vm3588, %v3587
      %s3653 = smul.u32 64, %s14
      %p3654 = scmp.lt.s32.totalorder %s3653, 127
      %s3655 = scalar_select %p3654, %s3653, 127
      %s3656 = smul.addr %s3655, 4
      %s3657 = scalar_lea.vmem %s3, %s3656
      // Predicated region
      $region33: #{tpu_custom_call.1} parent=31 // pred_check
        %p3658 = pneg %p100
      $region34: #{tpu_custom_call.1} parent=31 // pred_check_branch
        %3660 = sbr.rel (%p3658) target = $region36
      $region35: #{tpu_custom_call.1} parent=31 // pred_region
        %s3661 = smul.u32 64, %s14
      $region36: #{tpu_custom_call.1} parent=31 // pred_fallthru
        _
    $region32: #{tpu_custom_call.1} parent=5 // pred_fallthru
      _
    %p3662 = scmp.le.s32.totalorder 2, %s9
    // Predicated region
    $region37: #{tpu_custom_call.1} parent=5 // pred_check
      %p3663 = pneg %p3662
    $region38: #{tpu_custom_call.1} parent=5 // pred_check_branch
      %3665 = sbr.rel (%p3663) target = $region40
    $region39: #{tpu_custom_call.1} parent=5 // pred_region
      %s3666 = ssub.s32 %s9, 2
      // Predicated region
      $region41: #{tpu_custom_call.1} parent=39 // pred_check
        %p3667 = pneg %p106
      $region42: #{tpu_custom_call.1} parent=39 // pred_check_branch
        %3669 = sbr.rel (%p3667) target = $region44
      $region43: #{tpu_custom_call.1} parent=39 // pred_region
        %s3670 = smul.u32 64, %s15
        %p3671 = scmp.lt.s32.totalorder %s3670, 127
        %s3672 = scalar_select %p3671, %s3670, 127
        %s3673 = smul.addr %s3672, 4
        %s3674 = scalar_lea.vmem %s3, %s3673
      $region44: #{tpu_custom_call.1} parent=39 // pred_fallthru
        _
    $region40: #{tpu_custom_call.1} parent=5 // pred_fallthru
      _
  $region6: #{tpu_custom_call.1} parent=0 // loop_footer
    %s13 = sadd.s32 1, %s9
  $region7: #{tpu_custom_call.1} parent=0 // loop_footer_branch
    %8 = sbr.rel target = $region3
  $region8: #{tpu_custom_call.1} parent=0 // loop_exit
    _

</llo_original>
